<compile_context>
chip_gen: v6e
topology: v6e:2x2x1
jax: 0.10.0
libtpu: 0.0.40
codegen_flags: <defaults>
</compile_context>

<pallas_src>
import functools
import math

import jax
import jax.numpy as jnp
from jax.experimental import pallas as pl
from jax.experimental.pallas import tpu as pltpu


def _mha_kernel(q_ref, k_ref, v_ref, m_ref,
                wq_ref, bq_ref, wk_ref, bk_ref, wv_ref, bv_ref,
                wo_ref, bo_ref, o_ref, *, num_heads, head_dim):
    f32 = jnp.float32
    H, hd = num_heads, head_dim
    Bt, T1, _ = q_ref.shape
    _, T2, _ = k_ref.shape
    E_pad = o_ref.shape[-1]

    q = q_ref[...]                      # [Bt, T1, Dq]
    k = k_ref[...]                      # [Bt, T2, Dk]
    v = v_ref[...]                      # [Bt, T2, Dv]
    mask = m_ref[...].astype(f32)       # [Bt, 1, T2]  (broadcasts over T1)

    # Fused projections: fold (batch, time) into the sublane axis and project
    # all heads at once with lane-dense [D, H*hd] weights. f32 accumulation.
    q2 = q.reshape(Bt * T1, q.shape[-1])
    k2 = k.reshape(Bt * T2, k.shape[-1])
    v2 = v.reshape(Bt * T2, v.shape[-1])
    Q_all = (jnp.dot(q2, wq_ref[...], preferred_element_type=f32)
             + bq_ref[...]).reshape(Bt, T1, H * hd)
    K_all = (jnp.dot(k2, wk_ref[...], preferred_element_type=f32)
             + bk_ref[...]).reshape(Bt, T2, H * hd)
    V_all = (jnp.dot(v2, wv_ref[...], preferred_element_type=f32)
             + bv_ref[...]).reshape(Bt, T2, H * hd)

    scale = 1.0 / math.sqrt(hd)
    # Hoisted mask bias -- emitted once, not once per unrolled head.
    neg_bias = (1.0 - mask) * (-1.0e9)  # [Bt, 1, T2]

    out_acc = jnp.zeros((Bt * T1, E_pad), f32)
    for h in range(H):                  # static, small -> unrolled
        lo, hi = h * hd, (h + 1) * hd
        Qh = Q_all[:, :, lo:hi]         # [Bt, T1, hd]
        Kh = K_all[:, :, lo:hi]         # [Bt, T2, hd]
        Vh = V_all[:, :, lo:hi]         # [Bt, T2, hd]

        # Scores via last-dim contraction (no explicit K transpose).
        E = jnp.einsum("bqd,bkd->bqk", Qh, Kh,
                       preferred_element_type=f32) * scale   # [Bt, T1, T2]
        # PyTorch-style masking: E = mask*E + (1-mask)*(-1e9)
        E = E * mask + neg_bias
        # Numerically-stable softmax in f32; reciprocal on the EUP.
        E = E - jnp.max(E, axis=-1, keepdims=True)
        P = jnp.exp(E)
        A = P * pl.reciprocal(jnp.sum(P, axis=-1, keepdims=True), approx=True)

        Oh = jnp.einsum("bqk,bkd->bqd", A, Vh,
                        preferred_element_type=f32)           # [Bt, T1, hd]
        # Output projection accumulated per head:
        #   concat_h(O_h) @ Wo == sum_h O_h @ Wo[h*hd:(h+1)*hd, :]
        out_acc = out_acc + jnp.dot(Oh.reshape(Bt * T1, hd),
                                    wo_ref[lo:hi, :],
                                    preferred_element_type=f32)

    out_acc = out_acc + bo_ref[...]                            # [1, E_pad]
    o_ref[...] = out_acc.reshape(Bt, T1, E_pad).astype(o_ref.dtype)


def multi_head_attention(q, k, v, mask, params, *, num_heads, embed_dim,
                         batch_block=None):
    """params: dict with stacked per-head weights (see init_params below)."""
    B, T1, Dq = q.shape
    _, T2, Dk = k.shape
    _, _, Dv = v.shape
    assert embed_dim % num_heads == 0
    H = num_heads
    hd = embed_dim // H
    E_all = H * hd

    # ---- one-time layout plumbing in the wrapper (outside the kernel) ----
    # Fuse stacked per-head weights [H, D, hd] -> lane-dense [D, H*hd].
    wq = jnp.transpose(params["wq"], (1, 0, 2)).reshape(Dq, E_all)
    wk = jnp.transpose(params["wk"], (1, 0, 2)).reshape(Dk, E_all)
    wv = jnp.transpose(params["wv"], (1, 0, 2)).reshape(Dv, E_all)
    bq = params["bq"].reshape(1, E_all)
    bk = params["bk"].reshape(1, E_all)
    bv = params["bv"].reshape(1, E_all)
    # Pad output projection to a multiple of 128 lanes so the kernel's stores
    # are unmasked/lane-dense; padding columns are zero and sliced off below.
    E_pad = ((embed_dim + 127) // 128) * 128
    wo, bo = params["wo"], params["bo"]
    if E_pad != embed_dim:
        wo = jnp.pad(wo, ((0, 0), (0, E_pad - embed_dim)))
        bo = jnp.pad(bo, ((0, 0), (0, E_pad - embed_dim)))

    # Fold several batches per grid step at small shapes (amortize per-step
    # overhead, raise sublane occupancy); keep the fold modest so per-step
    # score tiles stay small at long sequence lengths.
    if batch_block is None:
        limit = max(1, 512 // max(T1, T2, 1))
        batch_block = 1
        for c in range(1, B + 1):
            if B % c == 0 and c <= limit:
                batch_block = c
    assert B % batch_block == 0
    Bt = batch_block
    grid = (B // Bt,)

    kernel = functools.partial(_mha_kernel, num_heads=H, head_dim=hd)
    const = lambda r, c: pl.BlockSpec((r, c), lambda b: (0, 0))

    itemsize = jnp.dtype(q.dtype).itemsize
    flops = (2 * B * (T1 * Dq + T2 * Dk + T2 * Dv) * E_all   # projections
             + 4 * B * H * T1 * T2 * hd                      # QK^T and A@V
             + 2 * B * T1 * E_all * E_pad)                   # output proj
    transcendentals = B * H * T1 * (T2 + 1)                  # exp + reciprocal
    bytes_accessed = (itemsize * (q.size + k.size + v.size + mask.size
                                  + B * T1 * E_pad)
                      + 4 * (wq.size + wk.size + wv.size + wo.size
                             + bq.size + bk.size + bv.size + bo.size))

    out = pl.pallas_call(
        kernel,
        out_shape=jax.ShapeDtypeStruct((B, T1, E_pad), q.dtype),
        grid_spec=pltpu.PrefetchScalarGridSpec(
            num_scalar_prefetch=0,
            grid=grid,
            in_specs=[
                pl.BlockSpec((Bt, T1, Dq), lambda b: (b, 0, 0)),
                pl.BlockSpec((Bt, T2, Dk), lambda b: (b, 0, 0)),
                pl.BlockSpec((Bt, T2, Dv), lambda b: (b, 0, 0)),
                pl.BlockSpec((Bt, 1, T2), lambda b: (b, 0, 0)),
                const(Dq, E_all), const(1, E_all),   # wq, bq (fused heads)
                const(Dk, E_all), const(1, E_all),   # wk, bk
                const(Dv, E_all), const(1, E_all),   # wv, bv
                const(E_all, E_pad), const(1, E_pad),  # wo, bo (lane-padded)
            ],
            out_specs=pl.BlockSpec((Bt, T1, E_pad), lambda b: (b, 0, 0)),
        ),
        compiler_params=pltpu.CompilerParams(
            dimension_semantics=("parallel",)),
        cost_estimate=pl.CostEstimate(
            flops=int(flops),
            transcendentals=int(transcendentals),
            bytes_accessed=int(bytes_accessed)),
    )(q, k, v, mask, wq, bq, wk, bk, wv, bv, wo, bo)

    return out[..., :embed_dim]


def init_params(key, q_dim, k_dim, v_dim, embed_dim, num_heads):
    hd = embed_dim // num_heads
    ks = jax.random.split(key, 8)
    u = lambda k, shape, fan_in: jax.random.uniform(
        k, shape, jnp.float32, -1.0 / math.sqrt(fan_in), 1.0 / math.sqrt(fan_in))
    return {
        # stacked per-head projection weights, stored [in, out]
        "wq": u(ks[0], (num_heads, q_dim, hd), q_dim),
        "bq": u(ks[1], (num_heads, hd), q_dim),
        "wk": u(ks[2], (num_heads, k_dim, hd), k_dim),
        "bk": u(ks[3], (num_heads, hd), k_dim),
        "wv": u(ks[4], (num_heads, v_dim, hd), v_dim),
        "bv": u(ks[5], (num_heads, hd), v_dim),
        "wo": u(ks[6], (num_heads * hd, embed_dim), num_heads * hd),
        "bo": u(ks[7], (1, embed_dim), num_heads * hd),
    }


def reference(q, k, v, mask, params, *, num_heads, embed_dim):
    hd = embed_dim // num_heads
    outs = []
    for h in range(num_heads):
        Q = jnp.einsum("btd,de->bte", q, params["wq"][h]) + params["bq"][h]
        K = jnp.einsum("btd,de->bte", k, params["wk"][h]) + params["bk"][h]
        V = jnp.einsum("btd,de->bte", v, params["wv"][h]) + params["bv"][h]
        E = jnp.einsum("bqe,bke->bqk", Q, K) / math.sqrt(hd)
        E = mask * E + (1.0 - mask) * (-1.0e9)
        A = jax.nn.softmax(E, axis=-1)
        outs.append(jnp.einsum("bqk,bke->bqe", A, V))
    cat = jnp.concatenate(outs, axis=-1)
    return jnp.einsum("bqe,ef->bqf", cat, params["wo"]) + params["bo"][0]


if __name__ == "__main__":
    B, T1, T2 = 2, 8, 8
    q_dim, k_dim, v_dim = 16, 16, 16
    embed_dim, num_heads = 32, 4

    key = jax.random.PRNGKey(0)
    kq, kk, kv, km, kp = jax.random.split(key, 5)
    q = jax.random.normal(kq, (B, T1, q_dim), jnp.float32)
    k = jax.random.normal(kk, (B, T2, k_dim), jnp.float32)
    v = jax.random.normal(kv, (B, T2, v_dim), jnp.float32)
    # mask [B, 1, T2] of 0/1 (broadcast over queries), last key position masked
    mask = jnp.ones((B, 1, T2), jnp.float32).at[:, :, -1].set(0.0)

    params = init_params(kp, q_dim, k_dim, v_dim, embed_dim, num_heads)

    out = multi_head_attention(q, k, v, mask, params,
                               num_heads=num_heads, embed_dim=embed_dim)
    out = jax.block_until_ready(out)

    ref = reference(q, k, v, mask, params,
                    num_heads=num_heads, embed_dim=embed_dim)
    assert out.shape == (B, T1, embed_dim)
    # Tolerance loosened slightly vs. 1e-4 because the softmax denominator
    # uses the EUP approximate reciprocal (pl.reciprocal(approx=True)).
    assert jnp.allclose(out, ref, atol=2e-3, rtol=2e-3), \
        f"max err {jnp.max(jnp.abs(out - ref))}"
    print("KERNEL_OK")
</pallas_src>

<mosaic_0001>
module attributes {stable_mosaic.version = 11 : i64} {
  func.func @_mha_kernel(%arg0: i32, %arg1: memref<2x8x16xf32, #tpu.memory_space<vmem>>, %arg2: memref<2x8x16xf32, #tpu.memory_space<vmem>>, %arg3: memref<2x8x16xf32, #tpu.memory_space<vmem>>, %arg4: memref<2x1x8xf32, #tpu.memory_space<vmem>>, %arg5: memref<16x32xf32, #tpu.memory_space<vmem>>, %arg6: memref<1x32xf32, #tpu.memory_space<vmem>>, %arg7: memref<16x32xf32, #tpu.memory_space<vmem>>, %arg8: memref<1x32xf32, #tpu.memory_space<vmem>>, %arg9: memref<16x32xf32, #tpu.memory_space<vmem>>, %arg10: memref<1x32xf32, #tpu.memory_space<vmem>>, %arg11: memref<32x128xf32, #tpu.memory_space<vmem>>, %arg12: memref<1x128xf32, #tpu.memory_space<vmem>>, %arg13: memref<2x8x128xf32, #tpu.memory_space<vmem>>) attributes {dimension_semantics = [#tpu.dimension_semantics<parallel>], iteration_bounds = array<i64: 1>, scalar_prefetch = 0 : i64, scratch_operands = 0 : i64, tpu.core_type = #tpu.core_type<tc>, window_params = [{transform_indices = @transform_0, window_bounds = array<i64: 2, 8, 16>}, {transform_indices = @transform_1, window_bounds = array<i64: 2, 8, 16>}, {transform_indices = @transform_2, window_bounds = array<i64: 2, 8, 16>}, {transform_indices = @transform_3, window_bounds = array<i64: 2, 1, 8>}, {pipeline_mode = #tpu.pipeline_mode<synchronous>, transform_indices = @transform_4, window_bounds = array<i64: 16, 32>}, {pipeline_mode = #tpu.pipeline_mode<synchronous>, transform_indices = @transform_5, window_bounds = array<i64: 1, 32>}, {pipeline_mode = #tpu.pipeline_mode<synchronous>, transform_indices = @transform_6, window_bounds = array<i64: 16, 32>}, {pipeline_mode = #tpu.pipeline_mode<synchronous>, transform_indices = @transform_7, window_bounds = array<i64: 1, 32>}, {pipeline_mode = #tpu.pipeline_mode<synchronous>, transform_indices = @transform_8, window_bounds = array<i64: 16, 32>}, {pipeline_mode = #tpu.pipeline_mode<synchronous>, transform_indices = @transform_9, window_bounds = array<i64: 1, 32>}, {pipeline_mode = #tpu.pipeline_mode<synchronous>, transform_indices = @transform_10, window_bounds = array<i64: 32, 128>}, {pipeline_mode = #tpu.pipeline_mode<synchronous>, transform_indices = @transform_11, window_bounds = array<i64: 1, 128>}, {transform_indices = @transform_12, window_bounds = array<i64: 2, 8, 128>}]} {
    %c0 = arith.constant 0 : index
    %c0_0 = arith.constant 0 : index
    %c0_1 = arith.constant 0 : index
    %0 = vector.load %arg1[%c0, %c0_0, %c0_1] : memref<2x8x16xf32, #tpu.memory_space<vmem>>, vector<2x8x16xf32>
    %c0_2 = arith.constant 0 : index
    %c0_3 = arith.constant 0 : index
    %c0_4 = arith.constant 0 : index
    %1 = vector.load %arg2[%c0_2, %c0_3, %c0_4] : memref<2x8x16xf32, #tpu.memory_space<vmem>>, vector<2x8x16xf32>
    %c0_5 = arith.constant 0 : index
    %c0_6 = arith.constant 0 : index
    %c0_7 = arith.constant 0 : index
    %2 = vector.load %arg3[%c0_5, %c0_6, %c0_7] : memref<2x8x16xf32, #tpu.memory_space<vmem>>, vector<2x8x16xf32>
    %c0_8 = arith.constant 0 : index
    %c0_9 = arith.constant 0 : index
    %c0_10 = arith.constant 0 : index
    %3 = vector.load %arg4[%c0_8, %c0_9, %c0_10] : memref<2x1x8xf32, #tpu.memory_space<vmem>>, vector<2x1x8xf32>
    %4 = vector.shape_cast %0 : vector<2x8x16xf32> to vector<16x16xf32>
    %5 = vector.shape_cast %1 : vector<2x8x16xf32> to vector<16x16xf32>
    %6 = vector.shape_cast %2 : vector<2x8x16xf32> to vector<16x16xf32>
    %c0_11 = arith.constant 0 : index
    %c0_12 = arith.constant 0 : index
    %7 = vector.load %arg5[%c0_11, %c0_12] : memref<16x32xf32, #tpu.memory_space<vmem>>, vector<16x32xf32>
    %cst = arith.constant dense<0.000000e+00> : vector<16x32xf32>
    %8 = tpu.matmul %4, %7, %cst {dimension_numbers = #tpu.dot_dimension_numbers<[1], [0], [0], [1], [0, 0, 1, 1], [], []>} : vector<16x16xf32>, vector<16x32xf32>, vector<16x32xf32> -> vector<16x32xf32>
    %c0_13 = arith.constant 0 : index
    %c0_14 = arith.constant 0 : index
    %9 = vector.load %arg6[%c0_13, %c0_14] : memref<1x32xf32, #tpu.memory_space<vmem>>, vector<1x32xf32>
    %10 = vector.broadcast %9 : vector<1x32xf32> to vector<16x32xf32>
    %11 = arith.addf %8, %10 : vector<16x32xf32>
    %12 = vector.shape_cast %11 : vector<16x32xf32> to vector<2x8x32xf32>
    %c0_15 = arith.constant 0 : index
    %c0_16 = arith.constant 0 : index
    %13 = vector.load %arg7[%c0_15, %c0_16] : memref<16x32xf32, #tpu.memory_space<vmem>>, vector<16x32xf32>
    %cst_17 = arith.constant dense<0.000000e+00> : vector<16x32xf32>
    %14 = tpu.matmul %5, %13, %cst_17 {dimension_numbers = #tpu.dot_dimension_numbers<[1], [0], [0], [1], [0, 0, 1, 1], [], []>} : vector<16x16xf32>, vector<16x32xf32>, vector<16x32xf32> -> vector<16x32xf32>
    %c0_18 = arith.constant 0 : index
    %c0_19 = arith.constant 0 : index
    %15 = vector.load %arg8[%c0_18, %c0_19] : memref<1x32xf32, #tpu.memory_space<vmem>>, vector<1x32xf32>
    %16 = vector.broadcast %15 : vector<1x32xf32> to vector<16x32xf32>
    %17 = arith.addf %14, %16 : vector<16x32xf32>
    %18 = vector.shape_cast %17 : vector<16x32xf32> to vector<2x8x32xf32>
    %c0_20 = arith.constant 0 : index
    %c0_21 = arith.constant 0 : index
    %19 = vector.load %arg9[%c0_20, %c0_21] : memref<16x32xf32, #tpu.memory_space<vmem>>, vector<16x32xf32>
    %cst_22 = arith.constant dense<0.000000e+00> : vector<16x32xf32>
    %20 = tpu.matmul %6, %19, %cst_22 {dimension_numbers = #tpu.dot_dimension_numbers<[1], [0], [0], [1], [0, 0, 1, 1], [], []>} : vector<16x16xf32>, vector<16x32xf32>, vector<16x32xf32> -> vector<16x32xf32>
    %c0_23 = arith.constant 0 : index
    %c0_24 = arith.constant 0 : index
    %21 = vector.load %arg10[%c0_23, %c0_24] : memref<1x32xf32, #tpu.memory_space<vmem>>, vector<1x32xf32>
    %22 = vector.broadcast %21 : vector<1x32xf32> to vector<16x32xf32>
    %23 = arith.addf %20, %22 : vector<16x32xf32>
    %24 = vector.shape_cast %23 : vector<16x32xf32> to vector<2x8x32xf32>
    %cst_25 = arith.constant 1.000000e+00 : f32
    %25 = vector.broadcast %cst_25 : f32 to vector<2x1x8xf32>
    %26 = arith.subf %25, %3 : vector<2x1x8xf32>
    %cst_26 = arith.constant -1.000000e+09 : f32
    %27 = vector.broadcast %cst_26 : f32 to vector<2x1x8xf32>
    %28 = arith.mulf %26, %27 : vector<2x1x8xf32>
    %cst_27 = arith.constant 0.000000e+00 : f32
    %29 = vector.broadcast %cst_27 : f32 to vector<16x128xf32>
    %30 = vector.extract_strided_slice %12 {offsets = [0, 0, 0], sizes = [2, 8, 8], strides = [1, 1, 1]} : vector<2x8x32xf32> to vector<2x8x8xf32>
    %31 = vector.extract_strided_slice %18 {offsets = [0, 0, 0], sizes = [2, 8, 8], strides = [1, 1, 1]} : vector<2x8x32xf32> to vector<2x8x8xf32>
    %32 = vector.extract_strided_slice %24 {offsets = [0, 0, 0], sizes = [2, 8, 8], strides = [1, 1, 1]} : vector<2x8x32xf32> to vector<2x8x8xf32>
    "tpu.trace_start"() <{level = 10 : i32, message = "bqd,bkd->bqk"}> : () -> ()
    %cst_28 = arith.constant dense<0.000000e+00> : vector<2x8x8xf32>
    %33 = tpu.matmul %30, %31, %cst_28 {dimension_numbers = #tpu.dot_dimension_numbers<[2], [2], [1], [1], [0, 0, 0, 1, 1, 1], [0], [0]>} : vector<2x8x8xf32>, vector<2x8x8xf32>, vector<2x8x8xf32> -> vector<2x8x8xf32>
    "tpu.trace_stop"() : () -> ()
    %cst_29 = arith.constant 0.353553385 : f32
    %34 = vector.broadcast %cst_29 : f32 to vector<2x8x8xf32>
    %35 = arith.mulf %33, %34 : vector<2x8x8xf32>
    %36 = vector.broadcast %3 : vector<2x1x8xf32> to vector<2x8x8xf32>
    %37 = arith.mulf %35, %36 : vector<2x8x8xf32>
    %38 = vector.broadcast %28 : vector<2x1x8xf32> to vector<2x8x8xf32>
    %39 = arith.addf %37, %38 : vector<2x8x8xf32>
    %cst_30 = arith.constant dense<0xFF800000> : vector<2x8xf32>
    %40 = vector.multi_reduction <maximumf>, %39, %cst_30 [2] : vector<2x8x8xf32> to vector<2x8xf32>
    %41 = vector.shape_cast %40 : vector<2x8xf32> to vector<2x8x1xf32>
    %42 = vector.broadcast %41 : vector<2x8x1xf32> to vector<2x8x8xf32>
    %43 = arith.subf %39, %42 : vector<2x8x8xf32>
    %44 = math.exp %43 : vector<2x8x8xf32>
    %cst_31 = arith.constant dense<0.000000e+00> : vector<2x8xf32>
    %45 = vector.multi_reduction <add>, %44, %cst_31 [2] : vector<2x8x8xf32> to vector<2x8xf32>
    %46 = vector.shape_cast %45 : vector<2x8xf32> to vector<2x8x1xf32>
    %47 = tpu.reciprocal %46 {approx = true} : vector<2x8x1xf32> -> vector<2x8x1xf32>
    %48 = vector.broadcast %47 : vector<2x8x1xf32> to vector<2x8x8xf32>
    %49 = arith.mulf %44, %48 : vector<2x8x8xf32>
    "tpu.trace_start"() <{level = 10 : i32, message = "bqk,bkd->bqd"}> : () -> ()
    %cst_32 = arith.constant dense<0.000000e+00> : vector<2x8x8xf32>
    %50 = tpu.matmul %49, %32, %cst_32 {dimension_numbers = #tpu.dot_dimension_numbers<[2], [1], [1], [2], [0, 0, 0, 1, 1, 2], [0], [0]>} : vector<2x8x8xf32>, vector<2x8x8xf32>, vector<2x8x8xf32> -> vector<2x8x8xf32>
    "tpu.trace_stop"() : () -> ()
    %51 = vector.shape_cast %50 : vector<2x8x8xf32> to vector<16x8xf32>
    %c0_33 = arith.constant 0 : index
    %c0_34 = arith.constant 0 : index
    %52 = vector.load %arg11[%c0_33, %c0_34] : memref<32x128xf32, #tpu.memory_space<vmem>>, vector<8x128xf32>
    %cst_35 = arith.constant dense<0.000000e+00> : vector<16x128xf32>
    %53 = tpu.matmul %51, %52, %cst_35 {dimension_numbers = #tpu.dot_dimension_numbers<[1], [0], [0], [1], [0, 0, 1, 1], [], []>} : vector<16x8xf32>, vector<8x128xf32>, vector<16x128xf32> -> vector<16x128xf32>
    %54 = arith.addf %29, %53 : vector<16x128xf32>
    %55 = vector.extract_strided_slice %12 {offsets = [0, 0, 8], sizes = [2, 8, 8], strides = [1, 1, 1]} : vector<2x8x32xf32> to vector<2x8x8xf32>
    %56 = vector.extract_strided_slice %18 {offsets = [0, 0, 8], sizes = [2, 8, 8], strides = [1, 1, 1]} : vector<2x8x32xf32> to vector<2x8x8xf32>
    %57 = vector.extract_strided_slice %24 {offsets = [0, 0, 8], sizes = [2, 8, 8], strides = [1, 1, 1]} : vector<2x8x32xf32> to vector<2x8x8xf32>
    "tpu.trace_start"() <{level = 10 : i32, message = "bqd,bkd->bqk"}> : () -> ()
    %cst_36 = arith.constant dense<0.000000e+00> : vector<2x8x8xf32>
    %58 = tpu.matmul %55, %56, %cst_36 {dimension_numbers = #tpu.dot_dimension_numbers<[2], [2], [1], [1], [0, 0, 0, 1, 1, 1], [0], [0]>} : vector<2x8x8xf32>, vector<2x8x8xf32>, vector<2x8x8xf32> -> vector<2x8x8xf32>
    "tpu.trace_stop"() : () -> ()
    %cst_37 = arith.constant 0.353553385 : f32
    %59 = vector.broadcast %cst_37 : f32 to vector<2x8x8xf32>
    %60 = arith.mulf %58, %59 : vector<2x8x8xf32>
    %61 = vector.broadcast %3 : vector<2x1x8xf32> to vector<2x8x8xf32>
    %62 = arith.mulf %60, %61 : vector<2x8x8xf32>
    %63 = vector.broadcast %28 : vector<2x1x8xf32> to vector<2x8x8xf32>
    %64 = arith.addf %62, %63 : vector<2x8x8xf32>
    %cst_38 = arith.constant dense<0xFF800000> : vector<2x8xf32>
    %65 = vector.multi_reduction <maximumf>, %64, %cst_38 [2] : vector<2x8x8xf32> to vector<2x8xf32>
    %66 = vector.shape_cast %65 : vector<2x8xf32> to vector<2x8x1xf32>
    %67 = vector.broadcast %66 : vector<2x8x1xf32> to vector<2x8x8xf32>
    %68 = arith.subf %64, %67 : vector<2x8x8xf32>
    %69 = math.exp %68 : vector<2x8x8xf32>
    %cst_39 = arith.constant dense<0.000000e+00> : vector<2x8xf32>
    %70 = vector.multi_reduction <add>, %69, %cst_39 [2] : vector<2x8x8xf32> to vector<2x8xf32>
    %71 = vector.shape_cast %70 : vector<2x8xf32> to vector<2x8x1xf32>
    %72 = tpu.reciprocal %71 {approx = true} : vector<2x8x1xf32> -> vector<2x8x1xf32>
    %73 = vector.broadcast %72 : vector<2x8x1xf32> to vector<2x8x8xf32>
    %74 = arith.mulf %69, %73 : vector<2x8x8xf32>
    "tpu.trace_start"() <{level = 10 : i32, message = "bqk,bkd->bqd"}> : () -> ()
    %cst_40 = arith.constant dense<0.000000e+00> : vector<2x8x8xf32>
    %75 = tpu.matmul %74, %57, %cst_40 {dimension_numbers = #tpu.dot_dimension_numbers<[2], [1], [1], [2], [0, 0, 0, 1, 1, 2], [0], [0]>} : vector<2x8x8xf32>, vector<2x8x8xf32>, vector<2x8x8xf32> -> vector<2x8x8xf32>
    "tpu.trace_stop"() : () -> ()
    %76 = vector.shape_cast %75 : vector<2x8x8xf32> to vector<16x8xf32>
    %c8 = arith.constant 8 : index
    %c0_41 = arith.constant 0 : index
    %77 = vector.load %arg11[%c8, %c0_41] : memref<32x128xf32, #tpu.memory_space<vmem>>, vector<8x128xf32>
    %cst_42 = arith.constant dense<0.000000e+00> : vector<16x128xf32>
    %78 = tpu.matmul %76, %77, %cst_42 {dimension_numbers = #tpu.dot_dimension_numbers<[1], [0], [0], [1], [0, 0, 1, 1], [], []>} : vector<16x8xf32>, vector<8x128xf32>, vector<16x128xf32> -> vector<16x128xf32>
    %79 = arith.addf %54, %78 : vector<16x128xf32>
    %80 = vector.extract_strided_slice %12 {offsets = [0, 0, 16], sizes = [2, 8, 8], strides = [1, 1, 1]} : vector<2x8x32xf32> to vector<2x8x8xf32>
    %81 = vector.extract_strided_slice %18 {offsets = [0, 0, 16], sizes = [2, 8, 8], strides = [1, 1, 1]} : vector<2x8x32xf32> to vector<2x8x8xf32>
    %82 = vector.extract_strided_slice %24 {offsets = [0, 0, 16], sizes = [2, 8, 8], strides = [1, 1, 1]} : vector<2x8x32xf32> to vector<2x8x8xf32>
    "tpu.trace_start"() <{level = 10 : i32, message = "bqd,bkd->bqk"}> : () -> ()
    %cst_43 = arith.constant dense<0.000000e+00> : vector<2x8x8xf32>
    %83 = tpu.matmul %80, %81, %cst_43 {dimension_numbers = #tpu.dot_dimension_numbers<[2], [2], [1], [1], [0, 0, 0, 1, 1, 1], [0], [0]>} : vector<2x8x8xf32>, vector<2x8x8xf32>, vector<2x8x8xf32> -> vector<2x8x8xf32>
    "tpu.trace_stop"() : () -> ()
    %cst_44 = arith.constant 0.353553385 : f32
    %84 = vector.broadcast %cst_44 : f32 to vector<2x8x8xf32>
    %85 = arith.mulf %83, %84 : vector<2x8x8xf32>
    %86 = vector.broadcast %3 : vector<2x1x8xf32> to vector<2x8x8xf32>
    %87 = arith.mulf %85, %86 : vector<2x8x8xf32>
    %88 = vector.broadcast %28 : vector<2x1x8xf32> to vector<2x8x8xf32>
    %89 = arith.addf %87, %88 : vector<2x8x8xf32>
    %cst_45 = arith.constant dense<0xFF800000> : vector<2x8xf32>
    %90 = vector.multi_reduction <maximumf>, %89, %cst_45 [2] : vector<2x8x8xf32> to vector<2x8xf32>
    %91 = vector.shape_cast %90 : vector<2x8xf32> to vector<2x8x1xf32>
    %92 = vector.broadcast %91 : vector<2x8x1xf32> to vector<2x8x8xf32>
    %93 = arith.subf %89, %92 : vector<2x8x8xf32>
    %94 = math.exp %93 : vector<2x8x8xf32>
    %cst_46 = arith.constant dense<0.000000e+00> : vector<2x8xf32>
    %95 = vector.multi_reduction <add>, %94, %cst_46 [2] : vector<2x8x8xf32> to vector<2x8xf32>
    %96 = vector.shape_cast %95 : vector<2x8xf32> to vector<2x8x1xf32>
    %97 = tpu.reciprocal %96 {approx = true} : vector<2x8x1xf32> -> vector<2x8x1xf32>
    %98 = vector.broadcast %97 : vector<2x8x1xf32> to vector<2x8x8xf32>
    %99 = arith.mulf %94, %98 : vector<2x8x8xf32>
    "tpu.trace_start"() <{level = 10 : i32, message = "bqk,bkd->bqd"}> : () -> ()
    %cst_47 = arith.constant dense<0.000000e+00> : vector<2x8x8xf32>
    %100 = tpu.matmul %99, %82, %cst_47 {dimension_numbers = #tpu.dot_dimension_numbers<[2], [1], [1], [2], [0, 0, 0, 1, 1, 2], [0], [0]>} : vector<2x8x8xf32>, vector<2x8x8xf32>, vector<2x8x8xf32> -> vector<2x8x8xf32>
    "tpu.trace_stop"() : () -> ()
    %101 = vector.shape_cast %100 : vector<2x8x8xf32> to vector<16x8xf32>
    %c16 = arith.constant 16 : index
    %c0_48 = arith.constant 0 : index
    %102 = vector.load %arg11[%c16, %c0_48] : memref<32x128xf32, #tpu.memory_space<vmem>>, vector<8x128xf32>
    %cst_49 = arith.constant dense<0.000000e+00> : vector<16x128xf32>
    %103 = tpu.matmul %101, %102, %cst_49 {dimension_numbers = #tpu.dot_dimension_numbers<[1], [0], [0], [1], [0, 0, 1, 1], [], []>} : vector<16x8xf32>, vector<8x128xf32>, vector<16x128xf32> -> vector<16x128xf32>
    %104 = arith.addf %79, %103 : vector<16x128xf32>
    %105 = vector.extract_strided_slice %12 {offsets = [0, 0, 24], sizes = [2, 8, 8], strides = [1, 1, 1]} : vector<2x8x32xf32> to vector<2x8x8xf32>
    %106 = vector.extract_strided_slice %18 {offsets = [0, 0, 24], sizes = [2, 8, 8], strides = [1, 1, 1]} : vector<2x8x32xf32> to vector<2x8x8xf32>
    %107 = vector.extract_strided_slice %24 {offsets = [0, 0, 24], sizes = [2, 8, 8], strides = [1, 1, 1]} : vector<2x8x32xf32> to vector<2x8x8xf32>
    "tpu.trace_start"() <{level = 10 : i32, message = "bqd,bkd->bqk"}> : () -> ()
    %cst_50 = arith.constant dense<0.000000e+00> : vector<2x8x8xf32>
    %108 = tpu.matmul %105, %106, %cst_50 {dimension_numbers = #tpu.dot_dimension_numbers<[2], [2], [1], [1], [0, 0, 0, 1, 1, 1], [0], [0]>} : vector<2x8x8xf32>, vector<2x8x8xf32>, vector<2x8x8xf32> -> vector<2x8x8xf32>
    "tpu.trace_stop"() : () -> ()
    %cst_51 = arith.constant 0.353553385 : f32
    %109 = vector.broadcast %cst_51 : f32 to vector<2x8x8xf32>
    %110 = arith.mulf %108, %109 : vector<2x8x8xf32>
    %111 = vector.broadcast %3 : vector<2x1x8xf32> to vector<2x8x8xf32>
    %112 = arith.mulf %110, %111 : vector<2x8x8xf32>
    %113 = vector.broadcast %28 : vector<2x1x8xf32> to vector<2x8x8xf32>
    %114 = arith.addf %112, %113 : vector<2x8x8xf32>
    %cst_52 = arith.constant dense<0xFF800000> : vector<2x8xf32>
    %115 = vector.multi_reduction <maximumf>, %114, %cst_52 [2] : vector<2x8x8xf32> to vector<2x8xf32>
    %116 = vector.shape_cast %115 : vector<2x8xf32> to vector<2x8x1xf32>
    %117 = vector.broadcast %116 : vector<2x8x1xf32> to vector<2x8x8xf32>
    %118 = arith.subf %114, %117 : vector<2x8x8xf32>
    %119 = math.exp %118 : vector<2x8x8xf32>
    %cst_53 = arith.constant dense<0.000000e+00> : vector<2x8xf32>
    %120 = vector.multi_reduction <add>, %119, %cst_53 [2] : vector<2x8x8xf32> to vector<2x8xf32>
    %121 = vector.shape_cast %120 : vector<2x8xf32> to vector<2x8x1xf32>
    %122 = tpu.reciprocal %121 {approx = true} : vector<2x8x1xf32> -> vector<2x8x1xf32>
    %123 = vector.broadcast %122 : vector<2x8x1xf32> to vector<2x8x8xf32>
    %124 = arith.mulf %119, %123 : vector<2x8x8xf32>
    "tpu.trace_start"() <{level = 10 : i32, message = "bqk,bkd->bqd"}> : () -> ()
    %cst_54 = arith.constant dense<0.000000e+00> : vector<2x8x8xf32>
    %125 = tpu.matmul %124, %107, %cst_54 {dimension_numbers = #tpu.dot_dimension_numbers<[2], [1], [1], [2], [0, 0, 0, 1, 1, 2], [0], [0]>} : vector<2x8x8xf32>, vector<2x8x8xf32>, vector<2x8x8xf32> -> vector<2x8x8xf32>
    "tpu.trace_stop"() : () -> ()
    %126 = vector.shape_cast %125 : vector<2x8x8xf32> to vector<16x8xf32>
    %c24 = arith.constant 24 : index
    %c0_55 = arith.constant 0 : index
    %127 = vector.load %arg11[%c24, %c0_55] : memref<32x128xf32, #tpu.memory_space<vmem>>, vector<8x128xf32>
    %cst_56 = arith.constant dense<0.000000e+00> : vector<16x128xf32>
    %128 = tpu.matmul %126, %127, %cst_56 {dimension_numbers = #tpu.dot_dimension_numbers<[1], [0], [0], [1], [0, 0, 1, 1], [], []>} : vector<16x8xf32>, vector<8x128xf32>, vector<16x128xf32> -> vector<16x128xf32>
    %129 = arith.addf %104, %128 : vector<16x128xf32>
    %c0_57 = arith.constant 0 : index
    %c0_58 = arith.constant 0 : index
    %130 = vector.load %arg12[%c0_57, %c0_58] : memref<1x128xf32, #tpu.memory_space<vmem>>, vector<1x128xf32>
    %131 = vector.broadcast %130 : vector<1x128xf32> to vector<16x128xf32>
    %132 = arith.addf %129, %131 : vector<16x128xf32>
    %133 = vector.shape_cast %132 : vector<16x128xf32> to vector<2x8x128xf32>
    %c0_59 = arith.constant 0 : index
    %c0_60 = arith.constant 0 : index
    %c0_61 = arith.constant 0 : index
    %134 = vector.load %arg13[%c0_59, %c0_60, %c0_61] : memref<2x8x128xf32, #tpu.memory_space<vmem>>, vector<2x8x128xf32>
    tpu.vector_store %arg13[%c0_59, %c0_60, %c0_61], %133 {strides = array<i32>} : memref<2x8x128xf32, #tpu.memory_space<vmem>>, vector<2x8x128xf32>,
    return
  }
  func.func @transform_0(%arg0: i32) -> (i32, i32, i32) {
    %c0_i32 = arith.constant 0 : i32
    %c0_i32_0 = arith.constant 0 : i32
    %c0_i32_1 = arith.constant 0 : i32
    return %arg0, %c0_i32, %c0_i32_0 : i32, i32, i32
  }
  func.func @transform_1(%arg0: i32) -> (i32, i32, i32) {
    %c0_i32 = arith.constant 0 : i32
    %c0_i32_0 = arith.constant 0 : i32
    %c0_i32_1 = arith.constant 0 : i32
    return %arg0, %c0_i32, %c0_i32_0 : i32, i32, i32
  }
  func.func @transform_2(%arg0: i32) -> (i32, i32, i32) {
    %c0_i32 = arith.constant 0 : i32
    %c0_i32_0 = arith.constant 0 : i32
    %c0_i32_1 = arith.constant 0 : i32
    return %arg0, %c0_i32, %c0_i32_0 : i32, i32, i32
  }
  func.func @transform_3(%arg0: i32) -> (i32, i32, i32) {
    %c0_i32 = arith.constant 0 : i32
    %c0_i32_0 = arith.constant 0 : i32
    %c0_i32_1 = arith.constant 0 : i32
    return %arg0, %c0_i32, %c0_i32_0 : i32, i32, i32
  }
  func.func @transform_4(%arg0: i32) -> (i32, i32) {
    %c0_i32 = arith.constant 0 : i32
    %c0_i32_0 = arith.constant 0 : i32
    %c0_i32_1 = arith.constant 0 : i32
    return %c0_i32, %c0_i32_0 : i32, i32
  }
  func.func @transform_5(%arg0: i32) -> (i32, i32) {
    %c0_i32 = arith.constant 0 : i32
    %c0_i32_0 = arith.constant 0 : i32
    %c0_i32_1 = arith.constant 0 : i32
    return %c0_i32, %c0_i32_0 : i32, i32
  }
  func.func @transform_6(%arg0: i32) -> (i32, i32) {
    %c0_i32 = arith.constant 0 : i32
    %c0_i32_0 = arith.constant 0 : i32
    %c0_i32_1 = arith.constant 0 : i32
    return %c0_i32, %c0_i32_0 : i32, i32
  }
  func.func @transform_7(%arg0: i32) -> (i32, i32) {
    %c0_i32 = arith.constant 0 : i32
    %c0_i32_0 = arith.constant 0 : i32
    %c0_i32_1 = arith.constant 0 : i32
    return %c0_i32, %c0_i32_0 : i32, i32
  }
  func.func @transform_8(%arg0: i32) -> (i32, i32) {
    %c0_i32 = arith.constant 0 : i32
    %c0_i32_0 = arith.constant 0 : i32
    %c0_i32_1 = arith.constant 0 : i32
    return %c0_i32, %c0_i32_0 : i32, i32
  }
  func.func @transform_9(%arg0: i32) -> (i32, i32) {
    %c0_i32 = arith.constant 0 : i32
    %c0_i32_0 = arith.constant 0 : i32
    %c0_i32_1 = arith.constant 0 : i32
    return %c0_i32, %c0_i32_0 : i32, i32
  }
  func.func @transform_10(%arg0: i32) -> (i32, i32) {
    %c0_i32 = arith.constant 0 : i32
    %c0_i32_0 = arith.constant 0 : i32
    %c0_i32_1 = arith.constant 0 : i32
    return %c0_i32, %c0_i32_0 : i32, i32
  }
  func.func @transform_11(%arg0: i32) -> (i32, i32) {
    %c0_i32 = arith.constant 0 : i32
    %c0_i32_0 = arith.constant 0 : i32
    %c0_i32_1 = arith.constant 0 : i32
    return %c0_i32, %c0_i32_0 : i32, i32
  }
  func.func @transform_12(%arg0: i32) -> (i32, i32, i32) {
    %c0_i32 = arith.constant 0 : i32
    %c0_i32_0 = arith.constant 0 : i32
    %c0_i32_1 = arith.constant 0 : i32
    return %arg0, %c0_i32, %c0_i32_0 : i32, i32, i32
  }
}

</mosaic_0001>

<llo_original>
// kernel: tpu_custom_call.1
$region0: #{tpu_custom_call.1}
  #allocation0 [shape = 'u32[]', space=smem, size = 0x4, offset = 0x4, fixed_abs, tag = 'smem constant byte address 0x4 - core index']
  #allocation1 [shape = 'u32[144,128]{1,0:T(1,128)}', space=vmem, size = 0x12000, scoped, tag = 'internal scratch']
  %s0 = inlined_call_operand.hbm [shape: f32[2,8,16], index: 0, kind: input, shape index: {}]
  %s1 = inlined_call_operand.hbm [shape: f32[2,8,16], index: 1, kind: input, shape index: {}]
  %s2 = inlined_call_operand.hbm [shape: f32[2,8,16], index: 2, kind: input, shape index: {}]
  %s3 = inlined_call_operand.vmem [shape: f32[2,1,8], index: 3, kind: input, shape index: {}]
  %s4 = inlined_call_operand.hbm [shape: f32[16,32], index: 4, kind: input, shape index: {}]
  %s5 = inlined_call_operand.vmem [shape: f32[1,32], index: 5, kind: input, shape index: {}]
  %s6 = inlined_call_operand.hbm [shape: f32[16,32], index: 6, kind: input, shape index: {}]
  %s7 = inlined_call_operand.vmem [shape: f32[1,32], index: 7, kind: input, shape index: {}]
  %s8 = inlined_call_operand.hbm [shape: f32[16,32], index: 8, kind: input, shape index: {}]
  %s9 = inlined_call_operand.vmem [shape: f32[1,32], index: 9, kind: input, shape index: {}]
  %s10 = inlined_call_operand.hbm [shape: f32[32,128], index: 10, kind: input, shape index: {}]
  %s11 = inlined_call_operand.vmem [shape: f32[1,128], index: 11, kind: input, shape index: {}]
  %s12 = inlined_call_operand.hbm [shape: f32[2,8,128], index: 12, kind: output, shape index: {}]
  %s13 = sld [smem:[#allocation0]]
  $region86: #{tpu_custom_call.1} parent=0
    _
  %s15 = ssub.s32 1, %s13
  %s16 = scalar_select 0, %s15, %s13
  $region1: #{tpu_custom_call.1} parent=0
    #allocation2 [shape = 'u8[8192]{0}', space=vmem, size = 0x2000, scoped, tag = 'input window, operand 0, single buffered']
    #allocation3 [shape = 's32[1]{0}', space=sflag, size = 0x4, scoped, tag = 'scoped memory for tpu_custom_call.1']
    #allocation4 [shape = 's32[1]{0}', space=sflag, size = 0x4, scoped, tag = 'scoped memory for tpu_custom_call.1']
    #allocation5 [shape = 'u8[8192]{0}', space=vmem, size = 0x2000, scoped, tag = 'input window, operand 1, single buffered']
    #allocation6 [shape = 's32[1]{0}', space=sflag, size = 0x4, scoped, tag = 'scoped memory for tpu_custom_call.1']
    #allocation7 [shape = 'u8[8192]{0}', space=vmem, size = 0x2000, scoped, tag = 'input window, operand 2, single buffered']
    #allocation8 [shape = 'u8[8192]{0}', space=vmem, size = 0x2000, scoped, tag = 'input window, operand 4, single buffered']
    #allocation9 [shape = 's32[1]{0}', space=sflag, size = 0x4, scoped, tag = 'scoped memory for tpu_custom_call.1']
    #allocation10 [shape = 'u8[8192]{0}', space=vmem, size = 0x2000, scoped, tag = 'input window, operand 6, single buffered']
    #allocation11 [shape = 'u8[8192]{0}', space=vmem, size = 0x2000, scoped, tag = 'input window, operand 8, single buffered']
    #allocation12 [shape = 's32[1]{0}', space=sflag, size = 0x4, scoped, tag = 'scoped memory for tpu_custom_call.1']
    #allocation13 [shape = 'u8[16384]{0}', space=vmem, size = 0x4000, scoped, tag = 'input window, operand 10, single buffered']
    #allocation14 [shape = 'u8[8192]{0}', space=vmem, size = 0x2000, scoped, tag = 'output window, operand 0, single buffered']
    %17 = vsyncpa [#allocation3], 0
    %18 = vsyncpa [#allocation6], 0
    %19 = vsyncpa [#allocation9], 0
    %20 = vsyncpa [#allocation12], 0
    %21 = vsyncpa [#allocation4], 0
    // Predicated region
    $region2: #{tpu_custom_call.1} parent=1 // pred_check
      _
    $region3: #{tpu_custom_call.1} parent=1 // pred_check_branch
      %23 = sbr.rel (0) target = $region5
    $region4: #{tpu_custom_call.1} parent=1 // pred_region
      %s25 = ssub.s32 256, 256
      %26 = vsyncadd [#allocation3], %s25
      %s27 = sshll.u32 [#allocation2], 4
      %s28 = int_to_ptr.vmem [resolvable:$true] %s27
      %33 = dma.hbm_to_vmem [thread:$0]  %s0, 256, %s28, [#allocation3], 128, 128, 8
    $region5: #{tpu_custom_call.1} parent=1 // pred_fallthru
      _
    // Predicated region
    $region6: #{tpu_custom_call.1} parent=1 // pred_check
      _
    $region7: #{tpu_custom_call.1} parent=1 // pred_check_branch
      %35 = sbr.rel (0) target = $region9
    $region8: #{tpu_custom_call.1} parent=1 // pred_region
      %s37 = ssub.s32 256, 256
      %38 = vsyncadd [#allocation6], %s37
      %s39 = sshll.u32 [#allocation5], 4
      %s40 = int_to_ptr.vmem [resolvable:$true] %s39
      %45 = dma.hbm_to_vmem [thread:$0]  %s1, 256, %s40, [#allocation6], 128, 128, 8
    $region9: #{tpu_custom_call.1} parent=1 // pred_fallthru
      _
    // Predicated region
    $region10: #{tpu_custom_call.1} parent=1 // pred_check
      _
    $region11: #{tpu_custom_call.1} parent=1 // pred_check_branch
      %47 = sbr.rel (0) target = $region13
    $region12: #{tpu_custom_call.1} parent=1 // pred_region
      %s49 = ssub.s32 256, 256
      %50 = vsyncadd [#allocation6], %s49
      %s51 = sshll.u32 [#allocation7], 4
      %s52 = int_to_ptr.vmem [resolvable:$true] %s51
      %57 = dma.hbm_to_vmem [thread:$0]  %s2, 256, %s52, [#allocation6], 128, 128, 8
    $region13: #{tpu_custom_call.1} parent=1 // pred_fallthru
      _
    // Predicated region
    $region14: #{tpu_custom_call.1} parent=1 // pred_check
      _
    $region15: #{tpu_custom_call.1} parent=1 // pred_check_branch
      %59 = sbr.rel (0) target = $region17
    $region16: #{tpu_custom_call.1} parent=1 // pred_region
      _
    $region17: #{tpu_custom_call.1} parent=1 // pred_fallthru
      _
    // Predicated region
    $region18: #{tpu_custom_call.1} parent=1 // pred_check
      _
    $region19: #{tpu_custom_call.1} parent=1 // pred_check_branch
      %61 = sbr.rel (0) target = $region21
    $region20: #{tpu_custom_call.1} parent=1 // pred_region
      %s63 = ssub.s32 256, 256
      %64 = vsyncadd [#allocation9], %s63
      %s65 = sshll.u32 [#allocation8], 4
      %s66 = int_to_ptr.vmem [resolvable:$true] %s65
      %71 = dma.hbm_to_vmem [thread:$0]  %s4, 256, %s66, [#allocation9], 128, 128, 8
    $region21: #{tpu_custom_call.1} parent=1 // pred_fallthru
      _
    // Predicated region
    $region22: #{tpu_custom_call.1} parent=1 // pred_check
      _
    $region23: #{tpu_custom_call.1} parent=1 // pred_check_branch
      %73 = sbr.rel (0) target = $region25
    $region24: #{tpu_custom_call.1} parent=1 // pred_region
      _
    $region25: #{tpu_custom_call.1} parent=1 // pred_fallthru
      _
    // Predicated region
    $region26: #{tpu_custom_call.1} parent=1 // pred_check
      _
    $region27: #{tpu_custom_call.1} parent=1 // pred_check_branch
      %75 = sbr.rel (0) target = $region29
    $region28: #{tpu_custom_call.1} parent=1 // pred_region
      %s77 = ssub.s32 256, 256
      %78 = vsyncadd [#allocation9], %s77
      %s79 = sshll.u32 [#allocation10], 4
      %s80 = int_to_ptr.vmem [resolvable:$true] %s79
      %85 = dma.hbm_to_vmem [thread:$0]  %s6, 256, %s80, [#allocation9], 128, 128, 8
    $region29: #{tpu_custom_call.1} parent=1 // pred_fallthru
      _
    // Predicated region
    $region30: #{tpu_custom_call.1} parent=1 // pred_check
      _
    $region31: #{tpu_custom_call.1} parent=1 // pred_check_branch
      %87 = sbr.rel (0) target = $region33
    $region32: #{tpu_custom_call.1} parent=1 // pred_region
      _
    $region33: #{tpu_custom_call.1} parent=1 // pred_fallthru
      _
    // Predicated region
    $region34: #{tpu_custom_call.1} parent=1 // pred_check
      _
    $region35: #{tpu_custom_call.1} parent=1 // pred_check_branch
      %89 = sbr.rel (0) target = $region37
    $region36: #{tpu_custom_call.1} parent=1 // pred_region
      %s91 = ssub.s32 256, 256
      %92 = vsyncadd [#allocation12], %s91
      %s93 = sshll.u32 [#allocation11], 4
      %s94 = int_to_ptr.vmem [resolvable:$true] %s93
      %99 = dma.hbm_to_vmem [thread:$0]  %s8, 256, %s94, [#allocation12], 128, 128, 8
    $region37: #{tpu_custom_call.1} parent=1 // pred_fallthru
      _
    // Predicated region
    $region38: #{tpu_custom_call.1} parent=1 // pred_check
      _
    $region39: #{tpu_custom_call.1} parent=1 // pred_check_branch
      %101 = sbr.rel (0) target = $region41
    $region40: #{tpu_custom_call.1} parent=1 // pred_region
      _
    $region41: #{tpu_custom_call.1} parent=1 // pred_fallthru
      _
    // Predicated region
    $region42: #{tpu_custom_call.1} parent=1 // pred_check
      _
    $region43: #{tpu_custom_call.1} parent=1 // pred_check_branch
      %103 = sbr.rel (0) target = $region45
    $region44: #{tpu_custom_call.1} parent=1 // pred_region
      %s105 = ssub.s32 512, 512
      %106 = vsyncadd [#allocation12], %s105
      %s107 = sshll.u32 [#allocation13], 4
      %s108 = int_to_ptr.vmem [resolvable:$true] %s107
      %113 = dma.hbm_to_vmem [thread:$0]  %s10, 512, %s108, [#allocation12], 128, 128, 8
    $region45: #{tpu_custom_call.1} parent=1 // pred_fallthru
      _
    // Predicated region
    $region46: #{tpu_custom_call.1} parent=1 // pred_check
      _
    $region47: #{tpu_custom_call.1} parent=1 // pred_check_branch
      %115 = sbr.rel (0) target = $region49
    $region48: #{tpu_custom_call.1} parent=1 // pred_region
      _
    $region49: #{tpu_custom_call.1} parent=1 // pred_fallthru
      _
    // Predicated region
    $region50: #{tpu_custom_call.1} parent=1 // pred_check
      _
    $region51: #{tpu_custom_call.1} parent=1 // pred_check_branch
      %117 = sbr.rel (0) target = $region53
    $region52: #{tpu_custom_call.1} parent=1 // pred_region
      %118 = dma.done [#allocation3], 256
    $region53: #{tpu_custom_call.1} parent=1 // pred_fallthru
      _
    // Predicated region
    $region54: #{tpu_custom_call.1} parent=1 // pred_check
      _
    $region55: #{tpu_custom_call.1} parent=1 // pred_check_branch
      %120 = sbr.rel (0) target = $region57
    $region56: #{tpu_custom_call.1} parent=1 // pred_region
      %121 = dma.done [#allocation6], 256
    $region57: #{tpu_custom_call.1} parent=1 // pred_fallthru
      _
    // Predicated region
    $region58: #{tpu_custom_call.1} parent=1 // pred_check
      _
    $region59: #{tpu_custom_call.1} parent=1 // pred_check_branch
      %123 = sbr.rel (0) target = $region61
    $region60: #{tpu_custom_call.1} parent=1 // pred_region
      %124 = dma.done [#allocation6], 256
    $region61: #{tpu_custom_call.1} parent=1 // pred_fallthru
      _
    // Predicated region
    $region62: #{tpu_custom_call.1} parent=1 // pred_check
      _
    $region63: #{tpu_custom_call.1} parent=1 // pred_check_branch
      %126 = sbr.rel (0) target = $region65
    $region64: #{tpu_custom_call.1} parent=1 // pred_region
      %127 = dma.done [#allocation9], 256
    $region65: #{tpu_custom_call.1} parent=1 // pred_fallthru
      _
    // Predicated region
    $region66: #{tpu_custom_call.1} parent=1 // pred_check
      _
    $region67: #{tpu_custom_call.1} parent=1 // pred_check_branch
      %129 = sbr.rel (0) target = $region69
    $region68: #{tpu_custom_call.1} parent=1 // pred_region
      %130 = dma.done [#allocation9], 256
    $region69: #{tpu_custom_call.1} parent=1 // pred_fallthru
      _
    // Predicated region
    $region70: #{tpu_custom_call.1} parent=1 // pred_check
      _
    $region71: #{tpu_custom_call.1} parent=1 // pred_check_branch
      %132 = sbr.rel (0) target = $region73
    $region72: #{tpu_custom_call.1} parent=1 // pred_region
      %133 = dma.done [#allocation12], 256
    $region73: #{tpu_custom_call.1} parent=1 // pred_fallthru
      _
    // Predicated region
    $region74: #{tpu_custom_call.1} parent=1 // pred_check
      _
    $region75: #{tpu_custom_call.1} parent=1 // pred_check_branch
      %135 = sbr.rel (0) target = $region77
    $region76: #{tpu_custom_call.1} parent=1 // pred_region
      %136 = dma.done [#allocation12], 512
    $region77: #{tpu_custom_call.1} parent=1 // pred_fallthru
      _
    %v137 = vld [vmem:[#allocation2] sm:$0xff]
    %v138 = vld [vmem:[#allocation2 + $0x8] sm:$0xff]
    %v139 = vld [vmem:[#allocation5] sm:$0xff]
    %v140 = vld [vmem:[#allocation5 + $0x8] sm:$0xff]
    %v141 = vld [vmem:[#allocation7] sm:$0xff]
    %v142 = vld [vmem:[#allocation7 + $0x8] sm:$0xff]
    %v143 = vld [vmem:[%s3] sm:$0x1]
    %v144 = vld [vmem:[%s3 + $0x1] sm:$0x1]
    %v145 = vld [vmem:[#allocation8] sm:$0xff]
    %v146 = vld [vmem:[#allocation8 + $0x8] sm:$0xff]
    %v147 = vld [vmem:[%s5] sm:$0x1]
    %v149 = vlaneseq
    %v150 = vshrl.u32 %v149, 7
    %v151 = vsub.s32 0, %v150
    %v152 = vrot.slane %v147, %v151
    %vm154 = vcmask 130048
    %v156 = vsel %vm154, %v137, 0
    %v159 = vsel %vm154, %v138, 0
    %161 = vmatprep.subr.mxu0 0.0
    %162 = vmatpush1.msra.mxu0 0.0
    %163 = vmatprep.subr.mxu0 0.0
    %164 = vmatpush1.msra.mxu0 0.0
    %165 = vmatprep.subr.mxu0 0.0
    %166 = vmatpush1.msra.mxu0 0.0
    %167 = vmatprep.subr.mxu0 0.0
    %168 = vmatpush1.msra.mxu0 0.0
    %169 = vmatprep.subr.mxu0 0.0
    %170 = vmatpush1.msra.mxu0 0.0
    %171 = vmatprep.subr.mxu0 0.0
    %172 = vmatpush1.msra.mxu0 0.0
    %173 = vmatprep.subr.mxu0 0.0
    %174 = vmatpush1.msra.mxu0 0.0
    %175 = vmatprep.subr.mxu0 0.0
    %176 = vmatpush1.msra.mxu0 0.0
    %177 = vmatprep.subr.mxu0 0.0
    %178 = vmatpush1.msra.mxu0 0.0
    %179 = vmatprep.subr.mxu0 0.0
    %180 = vmatpush1.msra.mxu0 0.0
    %181 = vmatprep.subr.mxu0 0.0
    %182 = vmatpush1.msra.mxu0 0.0
    %183 = vmatprep.subr.mxu0 0.0
    %184 = vmatpush1.msra.mxu0 0.0
    %185 = vmatprep.subr.mxu0 0.0
    %186 = vmatpush1.msra.mxu0 0.0
    %187 = vmatprep.subr.mxu0 0.0
    %188 = vmatpush1.msra.mxu0 0.0
    %189 = vmatprep.subr.mxu0 0.0
    %190 = vmatpush1.msra.mxu0 %v146
    %191 = vmatprep.subr.mxu0 0.0
    %192 = vmatpush1.msra.mxu0 %v145
    %193 = vmatprep.subr.mxu0 0.0
    %194 = vmatpush2.msra.mxu0 0.0
    %195 = vmatprep.subr.mxu0 0.0
    %196 = vmatpush2.msra.mxu0 0.0
    %197 = vmatprep.subr.mxu0 0.0
    %198 = vmatpush2.msra.mxu0 0.0
    %199 = vmatprep.subr.mxu0 0.0
    %200 = vmatpush2.msra.mxu0 0.0
    %201 = vmatprep.subr.mxu0 0.0
    %202 = vmatpush2.msra.mxu0 0.0
    %203 = vmatprep.subr.mxu0 0.0
    %204 = vmatpush2.msra.mxu0 0.0
    %205 = vmatprep.subr.mxu0 0.0
    %206 = vmatpush2.msra.mxu0 0.0
    %207 = vmatprep.subr.mxu0 0.0
    %208 = vmatpush2.msra.mxu0 0.0
    %209 = vmatprep.subr.mxu0 0.0
    %210 = vmatpush2.msra.mxu0 0.0
    %211 = vmatprep.subr.mxu0 0.0
    %212 = vmatpush2.msra.mxu0 0.0
    %213 = vmatprep.subr.mxu0 0.0
    %214 = vmatpush2.msra.mxu0 0.0
    %215 = vmatprep.subr.mxu0 0.0
    %216 = vmatpush2.msra.mxu0 0.0
    %217 = vmatprep.subr.mxu0 0.0
    %218 = vmatpush2.msra.mxu0 0.0
    %219 = vmatprep.subr.mxu0 0.0
    %220 = vmatpush2.msra.mxu0 0.0
    %221 = vmatprep.subr.mxu0 0.0
    %222 = vmatpush2.msra.mxu0 0.0
    %223 = vmatprep.subr.mxu0 0.0
    %224 = vmatpush2.msra.mxu0 0.0
    %225 = vmatprep.mubr.f32.mxu0 0.0
    %226 = vmatmul.mubr.f32.gmra.mxu0 %v156
    %v227 = vpop.f32.mrf.mxu0
    %v228 = vadd.f32 %v152, %v227
    %v229 = vpop.f32.mrf.mxu0
    %230 = vmatprep.mubr.f32.mxu0 0.0
    %231 = vmatmul.mubr.f32.gmra.mxu0 %v159
    %v232 = vpop.f32.mrf.mxu0
    %v233 = vadd.f32 %v152, %v232
    %v234 = vpop.f32.mrf.mxu0
    %235 = vdwg.mxu0
    %v236 = vld [vmem:[#allocation10] sm:$0xff]
    %v237 = vld [vmem:[#allocation10 + $0x8] sm:$0xff]
    %v238 = vld [vmem:[%s7] sm:$0x1]
    %v240 = vlaneseq
    %v241 = vshrl.u32 %v240, 7
    %v242 = vsub.s32 0, %v241
    %v243 = vrot.slane %v238, %v242
    %v246 = vsel %vm154, %v139, 0
    %v249 = vsel %vm154, %v140, 0
    %251 = vmatprep.subr.mxu0 0.0
    %252 = vmatpush1.msra.mxu0 0.0
    %253 = vmatprep.subr.mxu0 0.0
    %254 = vmatpush1.msra.mxu0 0.0
    %255 = vmatprep.subr.mxu0 0.0
    %256 = vmatpush1.msra.mxu0 0.0
    %257 = vmatprep.subr.mxu0 0.0
    %258 = vmatpush1.msra.mxu0 0.0
    %259 = vmatprep.subr.mxu0 0.0
    %260 = vmatpush1.msra.mxu0 0.0
    %261 = vmatprep.subr.mxu0 0.0
    %262 = vmatpush1.msra.mxu0 0.0
    %263 = vmatprep.subr.mxu0 0.0
    %264 = vmatpush1.msra.mxu0 0.0
    %265 = vmatprep.subr.mxu0 0.0
    %266 = vmatpush1.msra.mxu0 0.0
    %267 = vmatprep.subr.mxu0 0.0
    %268 = vmatpush1.msra.mxu0 0.0
    %269 = vmatprep.subr.mxu0 0.0
    %270 = vmatpush1.msra.mxu0 0.0
    %271 = vmatprep.subr.mxu0 0.0
    %272 = vmatpush1.msra.mxu0 0.0
    %273 = vmatprep.subr.mxu0 0.0
    %274 = vmatpush1.msra.mxu0 0.0
    %275 = vmatprep.subr.mxu0 0.0
    %276 = vmatpush1.msra.mxu0 0.0
    %277 = vmatprep.subr.mxu0 0.0
    %278 = vmatpush1.msra.mxu0 0.0
    %279 = vmatprep.subr.mxu0 0.0
    %280 = vmatpush1.msra.mxu0 %v237
    %281 = vmatprep.subr.mxu0 0.0
    %282 = vmatpush1.msra.mxu0 %v236
    %283 = vmatprep.subr.mxu0 0.0
    %284 = vmatpush2.msra.mxu0 0.0
    %285 = vmatprep.subr.mxu0 0.0
    %286 = vmatpush2.msra.mxu0 0.0
    %287 = vmatprep.subr.mxu0 0.0
    %288 = vmatpush2.msra.mxu0 0.0
    %289 = vmatprep.subr.mxu0 0.0
    %290 = vmatpush2.msra.mxu0 0.0
    %291 = vmatprep.subr.mxu0 0.0
    %292 = vmatpush2.msra.mxu0 0.0
    %293 = vmatprep.subr.mxu0 0.0
    %294 = vmatpush2.msra.mxu0 0.0
    %295 = vmatprep.subr.mxu0 0.0
    %296 = vmatpush2.msra.mxu0 0.0
    %297 = vmatprep.subr.mxu0 0.0
    %298 = vmatpush2.msra.mxu0 0.0
    %299 = vmatprep.subr.mxu0 0.0
    %300 = vmatpush2.msra.mxu0 0.0
    %301 = vmatprep.subr.mxu0 0.0
    %302 = vmatpush2.msra.mxu0 0.0
    %303 = vmatprep.subr.mxu0 0.0
    %304 = vmatpush2.msra.mxu0 0.0
    %305 = vmatprep.subr.mxu0 0.0
    %306 = vmatpush2.msra.mxu0 0.0
    %307 = vmatprep.subr.mxu0 0.0
    %308 = vmatpush2.msra.mxu0 0.0
    %309 = vmatprep.subr.mxu0 0.0
    %310 = vmatpush2.msra.mxu0 0.0
    %311 = vmatprep.subr.mxu0 0.0
    %312 = vmatpush2.msra.mxu0 0.0
    %313 = vmatprep.subr.mxu0 0.0
    %314 = vmatpush2.msra.mxu0 0.0
    %315 = vmatprep.mubr.f32.mxu0 0.0
    %316 = vmatmul.mubr.f32.gmra.mxu0 %v246
    %v317 = vpop.f32.mrf.mxu0
    %v318 = vadd.f32 %v243, %v317
    %v319 = vpop.f32.mrf.mxu0
    %320 = vmatprep.mubr.f32.mxu0 0.0
    %321 = vmatmul.mubr.f32.gmra.mxu0 %v249
    %v322 = vpop.f32.mrf.mxu0
    %v323 = vadd.f32 %v243, %v322
    %v324 = vpop.f32.mrf.mxu0
    %325 = vdwg.mxu0
    %v326 = vld [vmem:[#allocation11] sm:$0xff]
    %v327 = vld [vmem:[#allocation11 + $0x8] sm:$0xff]
    %v328 = vld [vmem:[%s9] sm:$0x1]
    %v330 = vlaneseq
    %v331 = vshrl.u32 %v330, 7
    %v332 = vsub.s32 0, %v331
    %v333 = vrot.slane %v328, %v332
    %v336 = vsel %vm154, %v141, 0
    %v339 = vsel %vm154, %v142, 0
    %341 = vmatprep.subr.mxu0 0.0
    %342 = vmatpush1.msra.mxu0 0.0
    %343 = vmatprep.subr.mxu0 0.0
    %344 = vmatpush1.msra.mxu0 0.0
    %345 = vmatprep.subr.mxu0 0.0
    %346 = vmatpush1.msra.mxu0 0.0
    %347 = vmatprep.subr.mxu0 0.0
    %348 = vmatpush1.msra.mxu0 0.0
    %349 = vmatprep.subr.mxu0 0.0
    %350 = vmatpush1.msra.mxu0 0.0
    %351 = vmatprep.subr.mxu0 0.0
    %352 = vmatpush1.msra.mxu0 0.0
    %353 = vmatprep.subr.mxu0 0.0
    %354 = vmatpush1.msra.mxu0 0.0
    %355 = vmatprep.subr.mxu0 0.0
    %356 = vmatpush1.msra.mxu0 0.0
    %357 = vmatprep.subr.mxu0 0.0
    %358 = vmatpush1.msra.mxu0 0.0
    %359 = vmatprep.subr.mxu0 0.0
    %360 = vmatpush1.msra.mxu0 0.0
    %361 = vmatprep.subr.mxu0 0.0
    %362 = vmatpush1.msra.mxu0 0.0
    %363 = vmatprep.subr.mxu0 0.0
    %364 = vmatpush1.msra.mxu0 0.0
    %365 = vmatprep.subr.mxu0 0.0
    %366 = vmatpush1.msra.mxu0 0.0
    %367 = vmatprep.subr.mxu0 0.0
    %368 = vmatpush1.msra.mxu0 0.0
    %369 = vmatprep.subr.mxu0 0.0
    %370 = vmatpush1.msra.mxu0 %v327
    %371 = vmatprep.subr.mxu0 0.0
    %372 = vmatpush1.msra.mxu0 %v326
    %373 = vmatprep.subr.mxu0 0.0
    %374 = vmatpush2.msra.mxu0 0.0
    %375 = vmatprep.subr.mxu0 0.0
    %376 = vmatpush2.msra.mxu0 0.0
    %377 = vmatprep.subr.mxu0 0.0
    %378 = vmatpush2.msra.mxu0 0.0
    %379 = vmatprep.subr.mxu0 0.0
    %380 = vmatpush2.msra.mxu0 0.0
    %381 = vmatprep.subr.mxu0 0.0
    %382 = vmatpush2.msra.mxu0 0.0
    %383 = vmatprep.subr.mxu0 0.0
    %384 = vmatpush2.msra.mxu0 0.0
    %385 = vmatprep.subr.mxu0 0.0
    %386 = vmatpush2.msra.mxu0 0.0
    %387 = vmatprep.subr.mxu0 0.0
    %388 = vmatpush2.msra.mxu0 0.0
    %389 = vmatprep.subr.mxu0 0.0
    %390 = vmatpush2.msra.mxu0 0.0
    %391 = vmatprep.subr.mxu0 0.0
    %392 = vmatpush2.msra.mxu0 0.0
    %393 = vmatprep.subr.mxu0 0.0
    %394 = vmatpush2.msra.mxu0 0.0
    %395 = vmatprep.subr.mxu0 0.0
    %396 = vmatpush2.msra.mxu0 0.0
    %397 = vmatprep.subr.mxu0 0.0
    %398 = vmatpush2.msra.mxu0 0.0
    %399 = vmatprep.subr.mxu0 0.0
    %400 = vmatpush2.msra.mxu0 0.0
    %401 = vmatprep.subr.mxu0 0.0
    %402 = vmatpush2.msra.mxu0 0.0
    %403 = vmatprep.subr.mxu0 0.0
    %404 = vmatpush2.msra.mxu0 0.0
    %405 = vmatprep.mubr.f32.mxu0 0.0
    %406 = vmatmul.mubr.f32.gmra.mxu0 %v336
    %v407 = vpop.f32.mrf.mxu0
    %v408 = vadd.f32 %v333, %v407
    %v409 = vpop.f32.mrf.mxu0
    %410 = vmatprep.mubr.f32.mxu0 0.0
    %411 = vmatmul.mubr.f32.gmra.mxu0 %v339
    %v412 = vpop.f32.mrf.mxu0
    %v413 = vadd.f32 %v333, %v412
    %v414 = vpop.f32.mrf.mxu0
    %415 = vdwg.mxu0
    %v416 = vsub.f32 1.0, %v143
    %v417 = vsub.f32 1.0, %v144
    %v418 = vmul.f32 %v416, -1e+09
    %v419 = vmul.f32 %v417, -1e+09
    %vm420 = vcmask 64512
    %v422 = vsel %vm420, %v228, 0
    %v425 = vsel %vm420, %v318, 0
    %427 = vmatprep.subr.mxu0 0.0
    %428 = vmatpush1.xpose.msra.mxu0 0.0
    %429 = vmatprep.subr.mxu0 0.0
    %430 = vmatpush1.xpose.msra.mxu0 0.0
    %431 = vmatprep.subr.mxu0 0.0
    %432 = vmatpush1.xpose.msra.mxu0 0.0
    %433 = vmatprep.subr.mxu0 0.0
    %434 = vmatpush1.xpose.msra.mxu0 0.0
    %435 = vmatprep.subr.mxu0 0.0
    %436 = vmatpush1.xpose.msra.mxu0 0.0
    %437 = vmatprep.subr.mxu0 0.0
    %438 = vmatpush1.xpose.msra.mxu0 0.0
    %439 = vmatprep.subr.mxu0 0.0
    %440 = vmatpush1.xpose.msra.mxu0 0.0
    %441 = vmatprep.subr.mxu0 0.0
    %442 = vmatpush1.xpose.msra.mxu0 0.0
    %443 = vmatprep.subr.mxu0 0.0
    %444 = vmatpush1.xpose.msra.mxu0 0.0
    %445 = vmatprep.subr.mxu0 0.0
    %446 = vmatpush1.xpose.msra.mxu0 0.0
    %447 = vmatprep.subr.mxu0 0.0
    %448 = vmatpush1.xpose.msra.mxu0 0.0
    %449 = vmatprep.subr.mxu0 0.0
    %450 = vmatpush1.xpose.msra.mxu0 0.0
    %451 = vmatprep.subr.mxu0 0.0
    %452 = vmatpush1.xpose.msra.mxu0 0.0
    %453 = vmatprep.subr.mxu0 0.0
    %454 = vmatpush1.xpose.msra.mxu0 0.0
    %455 = vmatprep.subr.mxu0 0.0
    %456 = vmatpush1.xpose.msra.mxu0 0.0
    %457 = vmatprep.subr.mxu0 0.0
    %458 = vmatpush1.xpose.msra.mxu0 %v425
    %459 = vmatprep.subr.mxu0 0.0
    %460 = vmatpush2.xpose.msra.mxu0 0.0
    %461 = vmatprep.subr.mxu0 0.0
    %462 = vmatpush2.xpose.msra.mxu0 0.0
    %463 = vmatprep.subr.mxu0 0.0
    %464 = vmatpush2.xpose.msra.mxu0 0.0
    %465 = vmatprep.subr.mxu0 0.0
    %466 = vmatpush2.xpose.msra.mxu0 0.0
    %467 = vmatprep.subr.mxu0 0.0
    %468 = vmatpush2.xpose.msra.mxu0 0.0
    %469 = vmatprep.subr.mxu0 0.0
    %470 = vmatpush2.xpose.msra.mxu0 0.0
    %471 = vmatprep.subr.mxu0 0.0
    %472 = vmatpush2.xpose.msra.mxu0 0.0
    %473 = vmatprep.subr.mxu0 0.0
    %474 = vmatpush2.xpose.msra.mxu0 0.0
    %475 = vmatprep.subr.mxu0 0.0
    %476 = vmatpush2.xpose.msra.mxu0 0.0
    %477 = vmatprep.subr.mxu0 0.0
    %478 = vmatpush2.xpose.msra.mxu0 0.0
    %479 = vmatprep.subr.mxu0 0.0
    %480 = vmatpush2.xpose.msra.mxu0 0.0
    %481 = vmatprep.subr.mxu0 0.0
    %482 = vmatpush2.xpose.msra.mxu0 0.0
    %483 = vmatprep.subr.mxu0 0.0
    %484 = vmatpush2.xpose.msra.mxu0 0.0
    %485 = vmatprep.subr.mxu0 0.0
    %486 = vmatpush2.xpose.msra.mxu0 0.0
    %487 = vmatprep.subr.mxu0 0.0
    %488 = vmatpush2.xpose.msra.mxu0 0.0
    %489 = vmatprep.subr.mxu0 0.0
    %490 = vmatpush2.xpose.msra.mxu0 0.0
    %491 = vmatprep.mubr.f32.mxu0 0.0
    %492 = vmatmul.mubr.f32.gmra.mxu0 %v422
    %v493 = vpop.f32.mrf.mxu0
    %v494 = vadd.f32 0.0, %v493
    %v495 = vpop.f32.mrf.mxu0
    %496 = vdwg.mxu0
    %v498 = vsel %vm420, %v233, 0
    %v501 = vsel %vm420, %v323, 0
    %503 = vmatprep.subr.mxu0 0.0
    %504 = vmatpush1.xpose.msra.mxu0 0.0
    %505 = vmatprep.subr.mxu0 0.0
    %506 = vmatpush1.xpose.msra.mxu0 0.0
    %507 = vmatprep.subr.mxu0 0.0
    %508 = vmatpush1.xpose.msra.mxu0 0.0
    %509 = vmatprep.subr.mxu0 0.0
    %510 = vmatpush1.xpose.msra.mxu0 0.0
    %511 = vmatprep.subr.mxu0 0.0
    %512 = vmatpush1.xpose.msra.mxu0 0.0
    %513 = vmatprep.subr.mxu0 0.0
    %514 = vmatpush1.xpose.msra.mxu0 0.0
    %515 = vmatprep.subr.mxu0 0.0
    %516 = vmatpush1.xpose.msra.mxu0 0.0
    %517 = vmatprep.subr.mxu0 0.0
    %518 = vmatpush1.xpose.msra.mxu0 0.0
    %519 = vmatprep.subr.mxu0 0.0
    %520 = vmatpush1.xpose.msra.mxu0 0.0
    %521 = vmatprep.subr.mxu0 0.0
    %522 = vmatpush1.xpose.msra.mxu0 0.0
    %523 = vmatprep.subr.mxu0 0.0
    %524 = vmatpush1.xpose.msra.mxu0 0.0
    %525 = vmatprep.subr.mxu0 0.0
    %526 = vmatpush1.xpose.msra.mxu0 0.0
    %527 = vmatprep.subr.mxu0 0.0
    %528 = vmatpush1.xpose.msra.mxu0 0.0
    %529 = vmatprep.subr.mxu0 0.0
    %530 = vmatpush1.xpose.msra.mxu0 0.0
    %531 = vmatprep.subr.mxu0 0.0
    %532 = vmatpush1.xpose.msra.mxu0 0.0
    %533 = vmatprep.subr.mxu0 0.0
    %534 = vmatpush1.xpose.msra.mxu0 %v501
    %535 = vmatprep.subr.mxu0 0.0
    %536 = vmatpush2.xpose.msra.mxu0 0.0
    %537 = vmatprep.subr.mxu0 0.0
    %538 = vmatpush2.xpose.msra.mxu0 0.0
    %539 = vmatprep.subr.mxu0 0.0
    %540 = vmatpush2.xpose.msra.mxu0 0.0
    %541 = vmatprep.subr.mxu0 0.0
    %542 = vmatpush2.xpose.msra.mxu0 0.0
    %543 = vmatprep.subr.mxu0 0.0
    %544 = vmatpush2.xpose.msra.mxu0 0.0
    %545 = vmatprep.subr.mxu0 0.0
    %546 = vmatpush2.xpose.msra.mxu0 0.0
    %547 = vmatprep.subr.mxu0 0.0
    %548 = vmatpush2.xpose.msra.mxu0 0.0
    %549 = vmatprep.subr.mxu0 0.0
    %550 = vmatpush2.xpose.msra.mxu0 0.0
    %551 = vmatprep.subr.mxu0 0.0
    %552 = vmatpush2.xpose.msra.mxu0 0.0
    %553 = vmatprep.subr.mxu0 0.0
    %554 = vmatpush2.xpose.msra.mxu0 0.0
    %555 = vmatprep.subr.mxu0 0.0
    %556 = vmatpush2.xpose.msra.mxu0 0.0
    %557 = vmatprep.subr.mxu0 0.0
    %558 = vmatpush2.xpose.msra.mxu0 0.0
    %559 = vmatprep.subr.mxu0 0.0
    %560 = vmatpush2.xpose.msra.mxu0 0.0
    %561 = vmatprep.subr.mxu0 0.0
    %562 = vmatpush2.xpose.msra.mxu0 0.0
    %563 = vmatprep.subr.mxu0 0.0
    %564 = vmatpush2.xpose.msra.mxu0 0.0
    %565 = vmatprep.subr.mxu0 0.0
    %566 = vmatpush2.xpose.msra.mxu0 0.0
    %567 = vmatprep.mubr.f32.mxu0 0.0
    %568 = vmatmul.mubr.f32.gmra.mxu0 %v498
    %v569 = vpop.f32.mrf.mxu0
    %v570 = vadd.f32 0.0, %v569
    %v571 = vpop.f32.mrf.mxu0
    %572 = vdwg.mxu0
    %v573 = vmul.f32 %v494, 0.35355338
    %v574 = vmul.f32 %v570, 0.35355338
    %v577 = vlaneseq
    %v578 = vshrl.u32 %v577, 7
    %v579 = vsub.s32 0, %v578
    %v580 = vrot.slane %v143, %v579
    %v581 = vlaneseq
    %v582 = vshrl.u32 %v581, 7
    %v583 = vsub.s32 0, %v582
    %v584 = vrot.slane %v144, %v583
    %v587 = vmul.f32 %v573, %v580
    %v588 = vmul.f32 %v574, %v584
    %v591 = vlaneseq
    %v592 = vshrl.u32 %v591, 7
    %v593 = vsub.s32 0, %v592
    %v594 = vrot.slane %v418, %v593
    %v595 = vlaneseq
    %v596 = vshrl.u32 %v595, 7
    %v597 = vsub.s32 0, %v596
    %v598 = vrot.slane %v419, %v597
    %v601 = vadd.f32 %v587, %v594
    %v602 = vadd.f32 %v588, %v598
    %v603 = vsel %vm420, %v601, -inf
    %604 = vmax.xlane.f32.xlu0 %v603
    %v605 = vpop.xlane.xlu0 %604
    %v606 = vsel %vm420, %v602, -inf
    %607 = vmax.xlane.f32.xlu0 %v606
    %v608 = vpop.xlane.xlu0 %607
    %v609 = vsub.f32 %v601, %v605
    %v610 = vsub.f32 %v602, %v608
    %v611 = vmul.f32 %v609, 1.442695
    %v612 = vpow.pop %v611
    %v613 = vmul.f32 %v610, 1.442695
    %v614 = vpow.pop %v613
    %v615 = vsel %vm420, %v612, 0.0
    %616 = vadd.xlane.f32.xlu0 %v615
    %v617 = vpop.xlane.xlu0 %616
    %v618 = vsel %vm420, %v614, 0.0
    %619 = vadd.xlane.f32.xlu0 %v618
    %v620 = vpop.xlane.xlu0 %619
    %v621 = vrcp.pop %v617
    %v622 = vrcp.pop %v620
    %v623 = vmul.f32 %v612, %v621
    %v624 = vmul.f32 %v614, %v622
    %v626 = vsel %vm420, %v623, 0
    %628 = vmatprep.subr.mxu0 0.0
    %629 = vmatpush1.msra.mxu0 0.0
    %630 = vmatprep.subr.mxu0 0.0
    %631 = vmatpush1.msra.mxu0 0.0
    %632 = vmatprep.subr.mxu0 0.0
    %633 = vmatpush1.msra.mxu0 0.0
    %634 = vmatprep.subr.mxu0 0.0
    %635 = vmatpush1.msra.mxu0 0.0
    %636 = vmatprep.subr.mxu0 0.0
    %637 = vmatpush1.msra.mxu0 0.0
    %638 = vmatprep.subr.mxu0 0.0
    %639 = vmatpush1.msra.mxu0 0.0
    %640 = vmatprep.subr.mxu0 0.0
    %641 = vmatpush1.msra.mxu0 0.0
    %642 = vmatprep.subr.mxu0 0.0
    %643 = vmatpush1.msra.mxu0 0.0
    %644 = vmatprep.subr.mxu0 0.0
    %645 = vmatpush1.msra.mxu0 0.0
    %646 = vmatprep.subr.mxu0 0.0
    %647 = vmatpush1.msra.mxu0 0.0
    %648 = vmatprep.subr.mxu0 0.0
    %649 = vmatpush1.msra.mxu0 0.0
    %650 = vmatprep.subr.mxu0 0.0
    %651 = vmatpush1.msra.mxu0 0.0
    %652 = vmatprep.subr.mxu0 0.0
    %653 = vmatpush1.msra.mxu0 0.0
    %654 = vmatprep.subr.mxu0 0.0
    %655 = vmatpush1.msra.mxu0 0.0
    %656 = vmatprep.subr.mxu0 0.0
    %657 = vmatpush1.msra.mxu0 0.0
    %658 = vmatprep.subr.mxu0 0.0
    %659 = vmatpush1.msra.mxu0 %v408
    %660 = vmatprep.subr.mxu0 0.0
    %661 = vmatpush2.msra.mxu0 0.0
    %662 = vmatprep.subr.mxu0 0.0
    %663 = vmatpush2.msra.mxu0 0.0
    %664 = vmatprep.subr.mxu0 0.0
    %665 = vmatpush2.msra.mxu0 0.0
    %666 = vmatprep.subr.mxu0 0.0
    %667 = vmatpush2.msra.mxu0 0.0
    %668 = vmatprep.subr.mxu0 0.0
    %669 = vmatpush2.msra.mxu0 0.0
    %670 = vmatprep.subr.mxu0 0.0
    %671 = vmatpush2.msra.mxu0 0.0
    %672 = vmatprep.subr.mxu0 0.0
    %673 = vmatpush2.msra.mxu0 0.0
    %674 = vmatprep.subr.mxu0 0.0
    %675 = vmatpush2.msra.mxu0 0.0
    %676 = vmatprep.subr.mxu0 0.0
    %677 = vmatpush2.msra.mxu0 0.0
    %678 = vmatprep.subr.mxu0 0.0
    %679 = vmatpush2.msra.mxu0 0.0
    %680 = vmatprep.subr.mxu0 0.0
    %681 = vmatpush2.msra.mxu0 0.0
    %682 = vmatprep.subr.mxu0 0.0
    %683 = vmatpush2.msra.mxu0 0.0
    %684 = vmatprep.subr.mxu0 0.0
    %685 = vmatpush2.msra.mxu0 0.0
    %686 = vmatprep.subr.mxu0 0.0
    %687 = vmatpush2.msra.mxu0 0.0
    %688 = vmatprep.subr.mxu0 0.0
    %689 = vmatpush2.msra.mxu0 0.0
    %690 = vmatprep.subr.mxu0 0.0
    %691 = vmatpush2.msra.mxu0 0.0
    %692 = vmatprep.mubr.f32.mxu0 0.0
    %693 = vmatmul.mubr.f32.gmra.mxu0 %v626
    %v694 = vpop.f32.mrf.mxu0
    %v695 = vadd.f32 0.0, %v694
    %v696 = vpop.f32.mrf.mxu0
    %697 = vdwg.mxu0
    %v699 = vsel %vm420, %v624, 0
    %701 = vmatprep.subr.mxu0 0.0
    %702 = vmatpush1.msra.mxu0 0.0
    %703 = vmatprep.subr.mxu0 0.0
    %704 = vmatpush1.msra.mxu0 0.0
    %705 = vmatprep.subr.mxu0 0.0
    %706 = vmatpush1.msra.mxu0 0.0
    %707 = vmatprep.subr.mxu0 0.0
    %708 = vmatpush1.msra.mxu0 0.0
    %709 = vmatprep.subr.mxu0 0.0
    %710 = vmatpush1.msra.mxu0 0.0
    %711 = vmatprep.subr.mxu0 0.0
    %712 = vmatpush1.msra.mxu0 0.0
    %713 = vmatprep.subr.mxu0 0.0
    %714 = vmatpush1.msra.mxu0 0.0
    %715 = vmatprep.subr.mxu0 0.0
    %716 = vmatpush1.msra.mxu0 0.0
    %717 = vmatprep.subr.mxu0 0.0
    %718 = vmatpush1.msra.mxu0 0.0
    %719 = vmatprep.subr.mxu0 0.0
    %720 = vmatpush1.msra.mxu0 0.0
    %721 = vmatprep.subr.mxu0 0.0
    %722 = vmatpush1.msra.mxu0 0.0
    %723 = vmatprep.subr.mxu0 0.0
    %724 = vmatpush1.msra.mxu0 0.0
    %725 = vmatprep.subr.mxu0 0.0
    %726 = vmatpush1.msra.mxu0 0.0
    %727 = vmatprep.subr.mxu0 0.0
    %728 = vmatpush1.msra.mxu0 0.0
    %729 = vmatprep.subr.mxu0 0.0
    %730 = vmatpush1.msra.mxu0 0.0
    %731 = vmatprep.subr.mxu0 0.0
    %732 = vmatpush1.msra.mxu0 %v413
    %733 = vmatprep.subr.mxu0 0.0
    %734 = vmatpush2.msra.mxu0 0.0
    %735 = vmatprep.subr.mxu0 0.0
    %736 = vmatpush2.msra.mxu0 0.0
    %737 = vmatprep.subr.mxu0 0.0
    %738 = vmatpush2.msra.mxu0 0.0
    %739 = vmatprep.subr.mxu0 0.0
    %740 = vmatpush2.msra.mxu0 0.0
    %741 = vmatprep.subr.mxu0 0.0
    %742 = vmatpush2.msra.mxu0 0.0
    %743 = vmatprep.subr.mxu0 0.0
    %744 = vmatpush2.msra.mxu0 0.0
    %745 = vmatprep.subr.mxu0 0.0
    %746 = vmatpush2.msra.mxu0 0.0
    %747 = vmatprep.subr.mxu0 0.0
    %748 = vmatpush2.msra.mxu0 0.0
    %749 = vmatprep.subr.mxu0 0.0
    %750 = vmatpush2.msra.mxu0 0.0
    %751 = vmatprep.subr.mxu0 0.0
    %752 = vmatpush2.msra.mxu0 0.0
    %753 = vmatprep.subr.mxu0 0.0
    %754 = vmatpush2.msra.mxu0 0.0
    %755 = vmatprep.subr.mxu0 0.0
    %756 = vmatpush2.msra.mxu0 0.0
    %757 = vmatprep.subr.mxu0 0.0
    %758 = vmatpush2.msra.mxu0 0.0
    %759 = vmatprep.subr.mxu0 0.0
    %760 = vmatpush2.msra.mxu0 0.0
    %761 = vmatprep.subr.mxu0 0.0
    %762 = vmatpush2.msra.mxu0 0.0
    %763 = vmatprep.subr.mxu0 0.0
    %764 = vmatpush2.msra.mxu0 0.0
    %765 = vmatprep.mubr.f32.mxu0 0.0
    %766 = vmatmul.mubr.f32.gmra.mxu0 %v699
    %v767 = vpop.f32.mrf.mxu0
    %v768 = vadd.f32 0.0, %v767
    %v769 = vpop.f32.mrf.mxu0
    %770 = vdwg.mxu0
    %v771 = vld [vmem:[#allocation13] sm:$0xff]
    %772 = vrot.lane.b32.xlu0 %v228, 120
    %v773 = vpop.permute.xlu0 %772
    %774 = vrot.lane.b32.xlu0 %v318, 120
    %v775 = vpop.permute.xlu0 %774
    %v776 = vsel %vm420, %v773, 0
    %v778 = vsel %vm420, %v775, 0
    %780 = vmatprep.subr.mxu0 0.0
    %781 = vmatpush1.xpose.msra.mxu0 0.0
    %782 = vmatprep.subr.mxu0 0.0
    %783 = vmatpush1.xpose.msra.mxu0 0.0
    %784 = vmatprep.subr.mxu0 0.0
    %785 = vmatpush1.xpose.msra.mxu0 0.0
    %786 = vmatprep.subr.mxu0 0.0
    %787 = vmatpush1.xpose.msra.mxu0 0.0
    %788 = vmatprep.subr.mxu0 0.0
    %789 = vmatpush1.xpose.msra.mxu0 0.0
    %790 = vmatprep.subr.mxu0 0.0
    %791 = vmatpush1.xpose.msra.mxu0 0.0
    %792 = vmatprep.subr.mxu0 0.0
    %793 = vmatpush1.xpose.msra.mxu0 0.0
    %794 = vmatprep.subr.mxu0 0.0
    %795 = vmatpush1.xpose.msra.mxu0 0.0
    %796 = vmatprep.subr.mxu0 0.0
    %797 = vmatpush1.xpose.msra.mxu0 0.0
    %798 = vmatprep.subr.mxu0 0.0
    %799 = vmatpush1.xpose.msra.mxu0 0.0
    %800 = vmatprep.subr.mxu0 0.0
    %801 = vmatpush1.xpose.msra.mxu0 0.0
    %802 = vmatprep.subr.mxu0 0.0
    %803 = vmatpush1.xpose.msra.mxu0 0.0
    %804 = vmatprep.subr.mxu0 0.0
    %805 = vmatpush1.xpose.msra.mxu0 0.0
    %806 = vmatprep.subr.mxu0 0.0
    %807 = vmatpush1.xpose.msra.mxu0 0.0
    %808 = vmatprep.subr.mxu0 0.0
    %809 = vmatpush1.xpose.msra.mxu0 0.0
    %810 = vmatprep.subr.mxu0 0.0
    %811 = vmatpush1.xpose.msra.mxu0 %v778
    %812 = vmatprep.subr.mxu0 0.0
    %813 = vmatpush2.xpose.msra.mxu0 0.0
    %814 = vmatprep.subr.mxu0 0.0
    %815 = vmatpush2.xpose.msra.mxu0 0.0
    %816 = vmatprep.subr.mxu0 0.0
    %817 = vmatpush2.xpose.msra.mxu0 0.0
    %818 = vmatprep.subr.mxu0 0.0
    %819 = vmatpush2.xpose.msra.mxu0 0.0
    %820 = vmatprep.subr.mxu0 0.0
    %821 = vmatpush2.xpose.msra.mxu0 0.0
    %822 = vmatprep.subr.mxu0 0.0
    %823 = vmatpush2.xpose.msra.mxu0 0.0
    %824 = vmatprep.subr.mxu0 0.0
    %825 = vmatpush2.xpose.msra.mxu0 0.0
    %826 = vmatprep.subr.mxu0 0.0
    %827 = vmatpush2.xpose.msra.mxu0 0.0
    %828 = vmatprep.subr.mxu0 0.0
    %829 = vmatpush2.xpose.msra.mxu0 0.0
    %830 = vmatprep.subr.mxu0 0.0
    %831 = vmatpush2.xpose.msra.mxu0 0.0
    %832 = vmatprep.subr.mxu0 0.0
    %833 = vmatpush2.xpose.msra.mxu0 0.0
    %834 = vmatprep.subr.mxu0 0.0
    %835 = vmatpush2.xpose.msra.mxu0 0.0
    %836 = vmatprep.subr.mxu0 0.0
    %837 = vmatpush2.xpose.msra.mxu0 0.0
    %838 = vmatprep.subr.mxu0 0.0
    %839 = vmatpush2.xpose.msra.mxu0 0.0
    %840 = vmatprep.subr.mxu0 0.0
    %841 = vmatpush2.xpose.msra.mxu0 0.0
    %842 = vmatprep.subr.mxu0 0.0
    %843 = vmatpush2.xpose.msra.mxu0 0.0
    %844 = vmatprep.mubr.f32.mxu0 0.0
    %845 = vmatmul.mubr.f32.gmra.mxu0 %v776
    %v846 = vpop.f32.mrf.mxu0
    %v847 = vadd.f32 0.0, %v846
    %v848 = vpop.f32.mrf.mxu0
    %849 = vdwg.mxu0
    %850 = vrot.lane.b32.xlu0 %v233, 120
    %v851 = vpop.permute.xlu0 %850
    %852 = vrot.lane.b32.xlu0 %v323, 120
    %v853 = vpop.permute.xlu0 %852
    %v854 = vsel %vm420, %v851, 0
    %v856 = vsel %vm420, %v853, 0
    %858 = vmatprep.subr.mxu0 0.0
    %859 = vmatpush1.xpose.msra.mxu0 0.0
    %860 = vmatprep.subr.mxu0 0.0
    %861 = vmatpush1.xpose.msra.mxu0 0.0
    %862 = vmatprep.subr.mxu0 0.0
    %863 = vmatpush1.xpose.msra.mxu0 0.0
    %864 = vmatprep.subr.mxu0 0.0
    %865 = vmatpush1.xpose.msra.mxu0 0.0
    %866 = vmatprep.subr.mxu0 0.0
    %867 = vmatpush1.xpose.msra.mxu0 0.0
    %868 = vmatprep.subr.mxu0 0.0
    %869 = vmatpush1.xpose.msra.mxu0 0.0
    %870 = vmatprep.subr.mxu0 0.0
    %871 = vmatpush1.xpose.msra.mxu0 0.0
    %872 = vmatprep.subr.mxu0 0.0
    %873 = vmatpush1.xpose.msra.mxu0 0.0
    %874 = vmatprep.subr.mxu0 0.0
    %875 = vmatpush1.xpose.msra.mxu0 0.0
    %876 = vmatprep.subr.mxu0 0.0
    %877 = vmatpush1.xpose.msra.mxu0 0.0
    %878 = vmatprep.subr.mxu0 0.0
    %879 = vmatpush1.xpose.msra.mxu0 0.0
    %880 = vmatprep.subr.mxu0 0.0
    %881 = vmatpush1.xpose.msra.mxu0 0.0
    %882 = vmatprep.subr.mxu0 0.0
    %883 = vmatpush1.xpose.msra.mxu0 0.0
    %884 = vmatprep.subr.mxu0 0.0
    %885 = vmatpush1.xpose.msra.mxu0 0.0
    %886 = vmatprep.subr.mxu0 0.0
    %887 = vmatpush1.xpose.msra.mxu0 0.0
    %888 = vmatprep.subr.mxu0 0.0
    %889 = vmatpush1.xpose.msra.mxu0 %v856
    %890 = vmatprep.subr.mxu0 0.0
    %891 = vmatpush2.xpose.msra.mxu0 0.0
    %892 = vmatprep.subr.mxu0 0.0
    %893 = vmatpush2.xpose.msra.mxu0 0.0
    %894 = vmatprep.subr.mxu0 0.0
    %895 = vmatpush2.xpose.msra.mxu0 0.0
    %896 = vmatprep.subr.mxu0 0.0
    %897 = vmatpush2.xpose.msra.mxu0 0.0
    %898 = vmatprep.subr.mxu0 0.0
    %899 = vmatpush2.xpose.msra.mxu0 0.0
    %900 = vmatprep.subr.mxu0 0.0
    %901 = vmatpush2.xpose.msra.mxu0 0.0
    %902 = vmatprep.subr.mxu0 0.0
    %903 = vmatpush2.xpose.msra.mxu0 0.0
    %904 = vmatprep.subr.mxu0 0.0
    %905 = vmatpush2.xpose.msra.mxu0 0.0
    %906 = vmatprep.subr.mxu0 0.0
    %907 = vmatpush2.xpose.msra.mxu0 0.0
    %908 = vmatprep.subr.mxu0 0.0
    %909 = vmatpush2.xpose.msra.mxu0 0.0
    %910 = vmatprep.subr.mxu0 0.0
    %911 = vmatpush2.xpose.msra.mxu0 0.0
    %912 = vmatprep.subr.mxu0 0.0
    %913 = vmatpush2.xpose.msra.mxu0 0.0
    %914 = vmatprep.subr.mxu0 0.0
    %915 = vmatpush2.xpose.msra.mxu0 0.0
    %916 = vmatprep.subr.mxu0 0.0
    %917 = vmatpush2.xpose.msra.mxu0 0.0
    %918 = vmatprep.subr.mxu0 0.0
    %919 = vmatpush2.xpose.msra.mxu0 0.0
    %920 = vmatprep.subr.mxu0 0.0
    %921 = vmatpush2.xpose.msra.mxu0 0.0
    %922 = vmatprep.mubr.f32.mxu0 0.0
    %923 = vmatmul.mubr.f32.gmra.mxu0 %v854
    %v924 = vpop.f32.mrf.mxu0
    %v925 = vadd.f32 0.0, %v924
    %v926 = vpop.f32.mrf.mxu0
    %927 = vdwg.mxu0
    %v928 = vmul.f32 %v847, 0.35355338
    %v929 = vmul.f32 %v925, 0.35355338
    %v930 = vmul.f32 %v928, %v580
    %v931 = vmul.f32 %v929, %v584
    %v932 = vadd.f32 %v930, %v594
    %v933 = vadd.f32 %v931, %v598
    %v934 = vsel %vm420, %v932, -inf
    %935 = vmax.xlane.f32.xlu0 %v934
    %v936 = vpop.xlane.xlu0 %935
    %v937 = vsel %vm420, %v933, -inf
    %938 = vmax.xlane.f32.xlu0 %v937
    %v939 = vpop.xlane.xlu0 %938
    %v940 = vsub.f32 %v932, %v936
    %v941 = vsub.f32 %v933, %v939
    %v942 = vmul.f32 %v940, 1.442695
    %v943 = vpow.pop %v942
    %v944 = vmul.f32 %v941, 1.442695
    %v945 = vpow.pop %v944
    %v946 = vsel %vm420, %v943, 0.0
    %947 = vadd.xlane.f32.xlu0 %v946
    %v948 = vpop.xlane.xlu0 %947
    %v949 = vsel %vm420, %v945, 0.0
    %950 = vadd.xlane.f32.xlu0 %v949
    %v951 = vpop.xlane.xlu0 %950
    %v952 = vrcp.pop %v948
    %v953 = vrcp.pop %v951
    %v954 = vmul.f32 %v943, %v952
    %v955 = vmul.f32 %v945, %v953
    %957 = vrot.lane.b32.xlu0 %v408, 120
    %v958 = vpop.permute.xlu0 %957
    %v961 = vsel %vm420, %v954, 0
    %963 = vmatprep.subr.mxu0 0.0
    %964 = vmatpush1.msra.mxu0 0.0
    %965 = vmatprep.subr.mxu0 0.0
    %966 = vmatpush1.msra.mxu0 0.0
    %967 = vmatprep.subr.mxu0 0.0
    %968 = vmatpush1.msra.mxu0 0.0
    %969 = vmatprep.subr.mxu0 0.0
    %970 = vmatpush1.msra.mxu0 0.0
    %971 = vmatprep.subr.mxu0 0.0
    %972 = vmatpush1.msra.mxu0 0.0
    %973 = vmatprep.subr.mxu0 0.0
    %974 = vmatpush1.msra.mxu0 0.0
    %975 = vmatprep.subr.mxu0 0.0
    %976 = vmatpush1.msra.mxu0 0.0
    %977 = vmatprep.subr.mxu0 0.0
    %978 = vmatpush1.msra.mxu0 0.0
    %979 = vmatprep.subr.mxu0 0.0
    %980 = vmatpush1.msra.mxu0 0.0
    %981 = vmatprep.subr.mxu0 0.0
    %982 = vmatpush1.msra.mxu0 0.0
    %983 = vmatprep.subr.mxu0 0.0
    %984 = vmatpush1.msra.mxu0 0.0
    %985 = vmatprep.subr.mxu0 0.0
    %986 = vmatpush1.msra.mxu0 0.0
    %987 = vmatprep.subr.mxu0 0.0
    %988 = vmatpush1.msra.mxu0 0.0
    %989 = vmatprep.subr.mxu0 0.0
    %990 = vmatpush1.msra.mxu0 0.0
    %991 = vmatprep.subr.mxu0 0.0
    %992 = vmatpush1.msra.mxu0 0.0
    %993 = vmatprep.subr.mxu0 0.0
    %994 = vmatpush1.msra.mxu0 %v958
    %995 = vmatprep.subr.mxu0 0.0
    %996 = vmatpush2.msra.mxu0 0.0
    %997 = vmatprep.subr.mxu0 0.0
    %998 = vmatpush2.msra.mxu0 0.0
    %999 = vmatprep.subr.mxu0 0.0
    %1000 = vmatpush2.msra.mxu0 0.0
    %1001 = vmatprep.subr.mxu0 0.0
    %1002 = vmatpush2.msra.mxu0 0.0
    %1003 = vmatprep.subr.mxu0 0.0
    %1004 = vmatpush2.msra.mxu0 0.0
    %1005 = vmatprep.subr.mxu0 0.0
    %1006 = vmatpush2.msra.mxu0 0.0
    %1007 = vmatprep.subr.mxu0 0.0
    %1008 = vmatpush2.msra.mxu0 0.0
    %1009 = vmatprep.subr.mxu0 0.0
    %1010 = vmatpush2.msra.mxu0 0.0
    %1011 = vmatprep.subr.mxu0 0.0
    %1012 = vmatpush2.msra.mxu0 0.0
    %1013 = vmatprep.subr.mxu0 0.0
    %1014 = vmatpush2.msra.mxu0 0.0
    %1015 = vmatprep.subr.mxu0 0.0
    %1016 = vmatpush2.msra.mxu0 0.0
    %1017 = vmatprep.subr.mxu0 0.0
    %1018 = vmatpush2.msra.mxu0 0.0
    %1019 = vmatprep.subr.mxu0 0.0
    %1020 = vmatpush2.msra.mxu0 0.0
    %1021 = vmatprep.subr.mxu0 0.0
    %1022 = vmatpush2.msra.mxu0 0.0
    %1023 = vmatprep.subr.mxu0 0.0
    %1024 = vmatpush2.msra.mxu0 0.0
    %1025 = vmatprep.subr.mxu0 0.0
    %1026 = vmatpush2.msra.mxu0 0.0
    %1027 = vmatprep.mubr.f32.mxu0 0.0
    %1028 = vmatmul.mubr.f32.gmra.mxu0 %v961
    %v1029 = vpop.f32.mrf.mxu0
    %v1030 = vadd.f32 0.0, %v1029
    %v1031 = vpop.f32.mrf.mxu0
    %1032 = vdwg.mxu0
    %1034 = vrot.lane.b32.xlu0 %v413, 120
    %v1035 = vpop.permute.xlu0 %1034
    %v1038 = vsel %vm420, %v955, 0
    %1040 = vmatprep.subr.mxu0 0.0
    %1041 = vmatpush1.msra.mxu0 0.0
    %1042 = vmatprep.subr.mxu0 0.0
    %1043 = vmatpush1.msra.mxu0 0.0
    %1044 = vmatprep.subr.mxu0 0.0
    %1045 = vmatpush1.msra.mxu0 0.0
    %1046 = vmatprep.subr.mxu0 0.0
    %1047 = vmatpush1.msra.mxu0 0.0
    %1048 = vmatprep.subr.mxu0 0.0
    %1049 = vmatpush1.msra.mxu0 0.0
    %1050 = vmatprep.subr.mxu0 0.0
    %1051 = vmatpush1.msra.mxu0 0.0
    %1052 = vmatprep.subr.mxu0 0.0
    %1053 = vmatpush1.msra.mxu0 0.0
    %1054 = vmatprep.subr.mxu0 0.0
    %1055 = vmatpush1.msra.mxu0 0.0
    %1056 = vmatprep.subr.mxu0 0.0
    %1057 = vmatpush1.msra.mxu0 0.0
    %1058 = vmatprep.subr.mxu0 0.0
    %1059 = vmatpush1.msra.mxu0 0.0
    %1060 = vmatprep.subr.mxu0 0.0
    %1061 = vmatpush1.msra.mxu0 0.0
    %1062 = vmatprep.subr.mxu0 0.0
    %1063 = vmatpush1.msra.mxu0 0.0
    %1064 = vmatprep.subr.mxu0 0.0
    %1065 = vmatpush1.msra.mxu0 0.0
    %1066 = vmatprep.subr.mxu0 0.0
    %1067 = vmatpush1.msra.mxu0 0.0
    %1068 = vmatprep.subr.mxu0 0.0
    %1069 = vmatpush1.msra.mxu0 0.0
    %1070 = vmatprep.subr.mxu0 0.0
    %1071 = vmatpush1.msra.mxu0 %v1035
    %1072 = vmatprep.subr.mxu0 0.0
    %1073 = vmatpush2.msra.mxu0 0.0
    %1074 = vmatprep.subr.mxu0 0.0
    %1075 = vmatpush2.msra.mxu0 0.0
    %1076 = vmatprep.subr.mxu0 0.0
    %1077 = vmatpush2.msra.mxu0 0.0
    %1078 = vmatprep.subr.mxu0 0.0
    %1079 = vmatpush2.msra.mxu0 0.0
    %1080 = vmatprep.subr.mxu0 0.0
    %1081 = vmatpush2.msra.mxu0 0.0
    %1082 = vmatprep.subr.mxu0 0.0
    %1083 = vmatpush2.msra.mxu0 0.0
    %1084 = vmatprep.subr.mxu0 0.0
    %1085 = vmatpush2.msra.mxu0 0.0
    %1086 = vmatprep.subr.mxu0 0.0
    %1087 = vmatpush2.msra.mxu0 0.0
    %1088 = vmatprep.subr.mxu0 0.0
    %1089 = vmatpush2.msra.mxu0 0.0
    %1090 = vmatprep.subr.mxu0 0.0
    %1091 = vmatpush2.msra.mxu0 0.0
    %1092 = vmatprep.subr.mxu0 0.0
    %1093 = vmatpush2.msra.mxu0 0.0
    %1094 = vmatprep.subr.mxu0 0.0
    %1095 = vmatpush2.msra.mxu0 0.0
    %1096 = vmatprep.subr.mxu0 0.0
    %1097 = vmatpush2.msra.mxu0 0.0
    %1098 = vmatprep.subr.mxu0 0.0
    %1099 = vmatpush2.msra.mxu0 0.0
    %1100 = vmatprep.subr.mxu0 0.0
    %1101 = vmatpush2.msra.mxu0 0.0
    %1102 = vmatprep.subr.mxu0 0.0
    %1103 = vmatpush2.msra.mxu0 0.0
    %1104 = vmatprep.mubr.f32.mxu0 0.0
    %1105 = vmatmul.mubr.f32.gmra.mxu0 %v1038
    %v1106 = vpop.f32.mrf.mxu0
    %v1107 = vadd.f32 0.0, %v1106
    %v1108 = vpop.f32.mrf.mxu0
    %1109 = vdwg.mxu0
    %v1110 = vld [vmem:[#allocation13 + $0x8] sm:$0xff]
    %v1112 = vsel %vm420, %v1030, 0
    %v1115 = vsel %vm420, %v1107, 0
    %1117 = vmatprep.subr.mxu0 0.0
    %1118 = vmatpush1.msra.mxu0 0.0
    %1119 = vmatprep.subr.mxu0 0.0
    %1120 = vmatpush1.msra.mxu0 0.0
    %1121 = vmatprep.subr.mxu0 0.0
    %1122 = vmatpush1.msra.mxu0 0.0
    %1123 = vmatprep.subr.mxu0 0.0
    %1124 = vmatpush1.msra.mxu0 0.0
    %1125 = vmatprep.subr.mxu0 0.0
    %1126 = vmatpush1.msra.mxu0 0.0
    %1127 = vmatprep.subr.mxu0 0.0
    %1128 = vmatpush1.msra.mxu0 0.0
    %1129 = vmatprep.subr.mxu0 0.0
    %1130 = vmatpush1.msra.mxu0 0.0
    %1131 = vmatprep.subr.mxu0 0.0
    %1132 = vmatpush1.msra.mxu0 0.0
    %1133 = vmatprep.subr.mxu0 0.0
    %1134 = vmatpush1.msra.mxu0 0.0
    %1135 = vmatprep.subr.mxu0 0.0
    %1136 = vmatpush1.msra.mxu0 0.0
    %1137 = vmatprep.subr.mxu0 0.0
    %1138 = vmatpush1.msra.mxu0 0.0
    %1139 = vmatprep.subr.mxu0 0.0
    %1140 = vmatpush1.msra.mxu0 0.0
    %1141 = vmatprep.subr.mxu0 0.0
    %1142 = vmatpush1.msra.mxu0 0.0
    %1143 = vmatprep.subr.mxu0 0.0
    %1144 = vmatpush1.msra.mxu0 0.0
    %1145 = vmatprep.subr.mxu0 0.0
    %1146 = vmatpush1.msra.mxu0 0.0
    %1147 = vmatprep.subr.mxu0 0.0
    %1148 = vmatpush1.msra.mxu0 %v1110
    %1149 = vmatprep.subr.mxu0 0.0
    %1150 = vmatpush2.msra.mxu0 0.0
    %1151 = vmatprep.subr.mxu0 0.0
    %1152 = vmatpush2.msra.mxu0 0.0
    %1153 = vmatprep.subr.mxu0 0.0
    %1154 = vmatpush2.msra.mxu0 0.0
    %1155 = vmatprep.subr.mxu0 0.0
    %1156 = vmatpush2.msra.mxu0 0.0
    %1157 = vmatprep.subr.mxu0 0.0
    %1158 = vmatpush2.msra.mxu0 0.0
    %1159 = vmatprep.subr.mxu0 0.0
    %1160 = vmatpush2.msra.mxu0 0.0
    %1161 = vmatprep.subr.mxu0 0.0
    %1162 = vmatpush2.msra.mxu0 0.0
    %1163 = vmatprep.subr.mxu0 0.0
    %1164 = vmatpush2.msra.mxu0 0.0
    %1165 = vmatprep.subr.mxu0 0.0
    %1166 = vmatpush2.msra.mxu0 0.0
    %1167 = vmatprep.subr.mxu0 0.0
    %1168 = vmatpush2.msra.mxu0 0.0
    %1169 = vmatprep.subr.mxu0 0.0
    %1170 = vmatpush2.msra.mxu0 0.0
    %1171 = vmatprep.subr.mxu0 0.0
    %1172 = vmatpush2.msra.mxu0 0.0
    %1173 = vmatprep.subr.mxu0 0.0
    %1174 = vmatpush2.msra.mxu0 0.0
    %1175 = vmatprep.subr.mxu0 0.0
    %1176 = vmatpush2.msra.mxu0 0.0
    %1177 = vmatprep.subr.mxu0 0.0
    %1178 = vmatpush2.msra.mxu0 0.0
    %1179 = vmatprep.subr.mxu0 0.0
    %1180 = vmatpush2.msra.mxu0 0.0
    %1181 = vmatprep.mubr.f32.mxu0 0.0
    %1182 = vmatmul.mubr.f32.gmra.mxu0 %v1112
    %v1183 = vpop.f32.mrf.mxu0
    %v1184 = vadd.f32 0.0, %v1183
    %v1185 = vpop.f32.mrf.mxu0
    %1186 = vmatprep.mubr.f32.mxu0 0.0
    %1187 = vmatmul.mubr.f32.gmra.mxu0 %v1115
    %v1188 = vpop.f32.mrf.mxu0
    %v1189 = vadd.f32 0.0, %v1188
    %v1190 = vpop.f32.mrf.mxu0
    %1191 = vdwg.mxu0
    %v1193 = vsel %vm420, %v695, 0
    %v1196 = vsel %vm420, %v768, 0
    %1198 = vmatprep.subr.mxu0 0.0
    %1199 = vmatpush1.msra.mxu0 0.0
    %1200 = vmatprep.subr.mxu0 0.0
    %1201 = vmatpush1.msra.mxu0 0.0
    %1202 = vmatprep.subr.mxu0 0.0
    %1203 = vmatpush1.msra.mxu0 0.0
    %1204 = vmatprep.subr.mxu0 0.0
    %1205 = vmatpush1.msra.mxu0 0.0
    %1206 = vmatprep.subr.mxu0 0.0
    %1207 = vmatpush1.msra.mxu0 0.0
    %1208 = vmatprep.subr.mxu0 0.0
    %1209 = vmatpush1.msra.mxu0 0.0
    %1210 = vmatprep.subr.mxu0 0.0
    %1211 = vmatpush1.msra.mxu0 0.0
    %1212 = vmatprep.subr.mxu0 0.0
    %1213 = vmatpush1.msra.mxu0 0.0
    %1214 = vmatprep.subr.mxu0 0.0
    %1215 = vmatpush1.msra.mxu0 0.0
    %1216 = vmatprep.subr.mxu0 0.0
    %1217 = vmatpush1.msra.mxu0 0.0
    %1218 = vmatprep.subr.mxu0 0.0
    %1219 = vmatpush1.msra.mxu0 0.0
    %1220 = vmatprep.subr.mxu0 0.0
    %1221 = vmatpush1.msra.mxu0 0.0
    %1222 = vmatprep.subr.mxu0 0.0
    %1223 = vmatpush1.msra.mxu0 0.0
    %1224 = vmatprep.subr.mxu0 0.0
    %1225 = vmatpush1.msra.mxu0 0.0
    %1226 = vmatprep.subr.mxu0 0.0
    %1227 = vmatpush1.msra.mxu0 0.0
    %1228 = vmatprep.subr.mxu0 0.0
    %1229 = vmatpush1.msra.mxu0 %v771
    %1230 = vmatprep.subr.mxu0 0.0
    %1231 = vmatpush2.msra.mxu0 0.0
    %1232 = vmatprep.subr.mxu0 0.0
    %1233 = vmatpush2.msra.mxu0 0.0
    %1234 = vmatprep.subr.mxu0 0.0
    %1235 = vmatpush2.msra.mxu0 0.0
    %1236 = vmatprep.subr.mxu0 0.0
    %1237 = vmatpush2.msra.mxu0 0.0
    %1238 = vmatprep.subr.mxu0 0.0
    %1239 = vmatpush2.msra.mxu0 0.0
    %1240 = vmatprep.subr.mxu0 0.0
    %1241 = vmatpush2.msra.mxu0 0.0
    %1242 = vmatprep.subr.mxu0 0.0
    %1243 = vmatpush2.msra.mxu0 0.0
    %1244 = vmatprep.subr.mxu0 0.0
    %1245 = vmatpush2.msra.mxu0 0.0
    %1246 = vmatprep.subr.mxu0 0.0
    %1247 = vmatpush2.msra.mxu0 0.0
    %1248 = vmatprep.subr.mxu0 0.0
    %1249 = vmatpush2.msra.mxu0 0.0
    %1250 = vmatprep.subr.mxu0 0.0
    %1251 = vmatpush2.msra.mxu0 0.0
    %1252 = vmatprep.subr.mxu0 0.0
    %1253 = vmatpush2.msra.mxu0 0.0
    %1254 = vmatprep.subr.mxu0 0.0
    %1255 = vmatpush2.msra.mxu0 0.0
    %1256 = vmatprep.subr.mxu0 0.0
    %1257 = vmatpush2.msra.mxu0 0.0
    %1258 = vmatprep.subr.mxu0 0.0
    %1259 = vmatpush2.msra.mxu0 0.0
    %1260 = vmatprep.subr.mxu0 0.0
    %1261 = vmatpush2.msra.mxu0 0.0
    %1262 = vmatprep.mubr.f32.mxu0 0.0
    %1263 = vmatmul.mubr.f32.gmra.mxu0 %v1193
    %v1264 = vpop.f32.mrf.mxu0
    %v1265 = vadd.f32 %v1184, %v1264
    %v1266 = vpop.f32.mrf.mxu0
    %1267 = vmatprep.mubr.f32.mxu0 0.0
    %1268 = vmatmul.mubr.f32.gmra.mxu0 %v1196
    %v1269 = vpop.f32.mrf.mxu0
    %v1270 = vadd.f32 %v1189, %v1269
    %v1271 = vpop.f32.mrf.mxu0
    %1272 = vdwg.mxu0
    %1273 = vrot.lane.b32.xlu0 %v228, 112
    %v1274 = vpop.permute.xlu0 %1273
    %1275 = vrot.lane.b32.xlu0 %v318, 112
    %v1276 = vpop.permute.xlu0 %1275
    %v1277 = vsel %vm420, %v1274, 0
    %v1279 = vsel %vm420, %v1276, 0
    %1281 = vmatprep.subr.mxu0 0.0
    %1282 = vmatpush1.xpose.msra.mxu0 0.0
    %1283 = vmatprep.subr.mxu0 0.0
    %1284 = vmatpush1.xpose.msra.mxu0 0.0
    %1285 = vmatprep.subr.mxu0 0.0
    %1286 = vmatpush1.xpose.msra.mxu0 0.0
    %1287 = vmatprep.subr.mxu0 0.0
    %1288 = vmatpush1.xpose.msra.mxu0 0.0
    %1289 = vmatprep.subr.mxu0 0.0
    %1290 = vmatpush1.xpose.msra.mxu0 0.0
    %1291 = vmatprep.subr.mxu0 0.0
    %1292 = vmatpush1.xpose.msra.mxu0 0.0
    %1293 = vmatprep.subr.mxu0 0.0
    %1294 = vmatpush1.xpose.msra.mxu0 0.0
    %1295 = vmatprep.subr.mxu0 0.0
    %1296 = vmatpush1.xpose.msra.mxu0 0.0
    %1297 = vmatprep.subr.mxu0 0.0
    %1298 = vmatpush1.xpose.msra.mxu0 0.0
    %1299 = vmatprep.subr.mxu0 0.0
    %1300 = vmatpush1.xpose.msra.mxu0 0.0
    %1301 = vmatprep.subr.mxu0 0.0
    %1302 = vmatpush1.xpose.msra.mxu0 0.0
    %1303 = vmatprep.subr.mxu0 0.0
    %1304 = vmatpush1.xpose.msra.mxu0 0.0
    %1305 = vmatprep.subr.mxu0 0.0
    %1306 = vmatpush1.xpose.msra.mxu0 0.0
    %1307 = vmatprep.subr.mxu0 0.0
    %1308 = vmatpush1.xpose.msra.mxu0 0.0
    %1309 = vmatprep.subr.mxu0 0.0
    %1310 = vmatpush1.xpose.msra.mxu0 0.0
    %1311 = vmatprep.subr.mxu0 0.0
    %1312 = vmatpush1.xpose.msra.mxu0 %v1279
    %1313 = vmatprep.subr.mxu0 0.0
    %1314 = vmatpush2.xpose.msra.mxu0 0.0
    %1315 = vmatprep.subr.mxu0 0.0
    %1316 = vmatpush2.xpose.msra.mxu0 0.0
    %1317 = vmatprep.subr.mxu0 0.0
    %1318 = vmatpush2.xpose.msra.mxu0 0.0
    %1319 = vmatprep.subr.mxu0 0.0
    %1320 = vmatpush2.xpose.msra.mxu0 0.0
    %1321 = vmatprep.subr.mxu0 0.0
    %1322 = vmatpush2.xpose.msra.mxu0 0.0
    %1323 = vmatprep.subr.mxu0 0.0
    %1324 = vmatpush2.xpose.msra.mxu0 0.0
    %1325 = vmatprep.subr.mxu0 0.0
    %1326 = vmatpush2.xpose.msra.mxu0 0.0
    %1327 = vmatprep.subr.mxu0 0.0
    %1328 = vmatpush2.xpose.msra.mxu0 0.0
    %1329 = vmatprep.subr.mxu0 0.0
    %1330 = vmatpush2.xpose.msra.mxu0 0.0
    %1331 = vmatprep.subr.mxu0 0.0
    %1332 = vmatpush2.xpose.msra.mxu0 0.0
    %1333 = vmatprep.subr.mxu0 0.0
    %1334 = vmatpush2.xpose.msra.mxu0 0.0
    %1335 = vmatprep.subr.mxu0 0.0
    %1336 = vmatpush2.xpose.msra.mxu0 0.0
    %1337 = vmatprep.subr.mxu0 0.0
    %1338 = vmatpush2.xpose.msra.mxu0 0.0
    %1339 = vmatprep.subr.mxu0 0.0
    %1340 = vmatpush2.xpose.msra.mxu0 0.0
    %1341 = vmatprep.subr.mxu0 0.0
    %1342 = vmatpush2.xpose.msra.mxu0 0.0
    %1343 = vmatprep.subr.mxu0 0.0
    %1344 = vmatpush2.xpose.msra.mxu0 0.0
    %1345 = vmatprep.mubr.f32.mxu0 0.0
    %1346 = vmatmul.mubr.f32.gmra.mxu0 %v1277
    %v1347 = vpop.f32.mrf.mxu0
    %v1348 = vadd.f32 0.0, %v1347
    %v1349 = vpop.f32.mrf.mxu0
    %1350 = vdwg.mxu0
    %1351 = vrot.lane.b32.xlu0 %v233, 112
    %v1352 = vpop.permute.xlu0 %1351
    %1353 = vrot.lane.b32.xlu0 %v323, 112
    %v1354 = vpop.permute.xlu0 %1353
    %v1355 = vsel %vm420, %v1352, 0
    %v1357 = vsel %vm420, %v1354, 0
    %1359 = vmatprep.subr.mxu0 0.0
    %1360 = vmatpush1.xpose.msra.mxu0 0.0
    %1361 = vmatprep.subr.mxu0 0.0
    %1362 = vmatpush1.xpose.msra.mxu0 0.0
    %1363 = vmatprep.subr.mxu0 0.0
    %1364 = vmatpush1.xpose.msra.mxu0 0.0
    %1365 = vmatprep.subr.mxu0 0.0
    %1366 = vmatpush1.xpose.msra.mxu0 0.0
    %1367 = vmatprep.subr.mxu0 0.0
    %1368 = vmatpush1.xpose.msra.mxu0 0.0
    %1369 = vmatprep.subr.mxu0 0.0
    %1370 = vmatpush1.xpose.msra.mxu0 0.0
    %1371 = vmatprep.subr.mxu0 0.0
    %1372 = vmatpush1.xpose.msra.mxu0 0.0
    %1373 = vmatprep.subr.mxu0 0.0
    %1374 = vmatpush1.xpose.msra.mxu0 0.0
    %1375 = vmatprep.subr.mxu0 0.0
    %1376 = vmatpush1.xpose.msra.mxu0 0.0
    %1377 = vmatprep.subr.mxu0 0.0
    %1378 = vmatpush1.xpose.msra.mxu0 0.0
    %1379 = vmatprep.subr.mxu0 0.0
    %1380 = vmatpush1.xpose.msra.mxu0 0.0
    %1381 = vmatprep.subr.mxu0 0.0
    %1382 = vmatpush1.xpose.msra.mxu0 0.0
    %1383 = vmatprep.subr.mxu0 0.0
    %1384 = vmatpush1.xpose.msra.mxu0 0.0
    %1385 = vmatprep.subr.mxu0 0.0
    %1386 = vmatpush1.xpose.msra.mxu0 0.0
    %1387 = vmatprep.subr.mxu0 0.0
    %1388 = vmatpush1.xpose.msra.mxu0 0.0
    %1389 = vmatprep.subr.mxu0 0.0
    %1390 = vmatpush1.xpose.msra.mxu0 %v1357
    %1391 = vmatprep.subr.mxu0 0.0
    %1392 = vmatpush2.xpose.msra.mxu0 0.0
    %1393 = vmatprep.subr.mxu0 0.0
    %1394 = vmatpush2.xpose.msra.mxu0 0.0
    %1395 = vmatprep.subr.mxu0 0.0
    %1396 = vmatpush2.xpose.msra.mxu0 0.0
    %1397 = vmatprep.subr.mxu0 0.0
    %1398 = vmatpush2.xpose.msra.mxu0 0.0
    %1399 = vmatprep.subr.mxu0 0.0
    %1400 = vmatpush2.xpose.msra.mxu0 0.0
    %1401 = vmatprep.subr.mxu0 0.0
    %1402 = vmatpush2.xpose.msra.mxu0 0.0
    %1403 = vmatprep.subr.mxu0 0.0
    %1404 = vmatpush2.xpose.msra.mxu0 0.0
    %1405 = vmatprep.subr.mxu0 0.0
    %1406 = vmatpush2.xpose.msra.mxu0 0.0
    %1407 = vmatprep.subr.mxu0 0.0
    %1408 = vmatpush2.xpose.msra.mxu0 0.0
    %1409 = vmatprep.subr.mxu0 0.0
    %1410 = vmatpush2.xpose.msra.mxu0 0.0
    %1411 = vmatprep.subr.mxu0 0.0
    %1412 = vmatpush2.xpose.msra.mxu0 0.0
    %1413 = vmatprep.subr.mxu0 0.0
    %1414 = vmatpush2.xpose.msra.mxu0 0.0
    %1415 = vmatprep.subr.mxu0 0.0
    %1416 = vmatpush2.xpose.msra.mxu0 0.0
    %1417 = vmatprep.subr.mxu0 0.0
    %1418 = vmatpush2.xpose.msra.mxu0 0.0
    %1419 = vmatprep.subr.mxu0 0.0
    %1420 = vmatpush2.xpose.msra.mxu0 0.0
    %1421 = vmatprep.subr.mxu0 0.0
    %1422 = vmatpush2.xpose.msra.mxu0 0.0
    %1423 = vmatprep.mubr.f32.mxu0 0.0
    %1424 = vmatmul.mubr.f32.gmra.mxu0 %v1355
    %v1425 = vpop.f32.mrf.mxu0
    %v1426 = vadd.f32 0.0, %v1425
    %v1427 = vpop.f32.mrf.mxu0
    %1428 = vdwg.mxu0
    %v1429 = vmul.f32 %v1348, 0.35355338
    %v1430 = vmul.f32 %v1426, 0.35355338
    %v1431 = vmul.f32 %v1429, %v580
    %v1432 = vmul.f32 %v1430, %v584
    %v1433 = vadd.f32 %v1431, %v594
    %v1434 = vadd.f32 %v1432, %v598
    %v1435 = vsel %vm420, %v1433, -inf
    %1436 = vmax.xlane.f32.xlu0 %v1435
    %v1437 = vpop.xlane.xlu0 %1436
    %v1438 = vsel %vm420, %v1434, -inf
    %1439 = vmax.xlane.f32.xlu0 %v1438
    %v1440 = vpop.xlane.xlu0 %1439
    %v1441 = vsub.f32 %v1433, %v1437
    %v1442 = vsub.f32 %v1434, %v1440
    %v1443 = vmul.f32 %v1441, 1.442695
    %v1444 = vpow.pop %v1443
    %v1445 = vmul.f32 %v1442, 1.442695
    %v1446 = vpow.pop %v1445
    %v1447 = vsel %vm420, %v1444, 0.0
    %1448 = vadd.xlane.f32.xlu0 %v1447
    %v1449 = vpop.xlane.xlu0 %1448
    %v1450 = vsel %vm420, %v1446, 0.0
    %1451 = vadd.xlane.f32.xlu0 %v1450
    %v1452 = vpop.xlane.xlu0 %1451
    %v1453 = vrcp.pop %v1449
    %v1454 = vrcp.pop %v1452
    %v1455 = vmul.f32 %v1444, %v1453
    %v1456 = vmul.f32 %v1446, %v1454
    %1457 = vrot.lane.b32.xlu0 %v408, 112
    %v1458 = vpop.permute.xlu0 %1457
    %v1461 = vsel %vm420, %v1455, 0
    %1463 = vmatprep.subr.mxu0 0.0
    %1464 = vmatpush1.msra.mxu0 0.0
    %1465 = vmatprep.subr.mxu0 0.0
    %1466 = vmatpush1.msra.mxu0 0.0
    %1467 = vmatprep.subr.mxu0 0.0
    %1468 = vmatpush1.msra.mxu0 0.0
    %1469 = vmatprep.subr.mxu0 0.0
    %1470 = vmatpush1.msra.mxu0 0.0
    %1471 = vmatprep.subr.mxu0 0.0
    %1472 = vmatpush1.msra.mxu0 0.0
    %1473 = vmatprep.subr.mxu0 0.0
    %1474 = vmatpush1.msra.mxu0 0.0
    %1475 = vmatprep.subr.mxu0 0.0
    %1476 = vmatpush1.msra.mxu0 0.0
    %1477 = vmatprep.subr.mxu0 0.0
    %1478 = vmatpush1.msra.mxu0 0.0
    %1479 = vmatprep.subr.mxu0 0.0
    %1480 = vmatpush1.msra.mxu0 0.0
    %1481 = vmatprep.subr.mxu0 0.0
    %1482 = vmatpush1.msra.mxu0 0.0
    %1483 = vmatprep.subr.mxu0 0.0
    %1484 = vmatpush1.msra.mxu0 0.0
    %1485 = vmatprep.subr.mxu0 0.0
    %1486 = vmatpush1.msra.mxu0 0.0
    %1487 = vmatprep.subr.mxu0 0.0
    %1488 = vmatpush1.msra.mxu0 0.0
    %1489 = vmatprep.subr.mxu0 0.0
    %1490 = vmatpush1.msra.mxu0 0.0
    %1491 = vmatprep.subr.mxu0 0.0
    %1492 = vmatpush1.msra.mxu0 0.0
    %1493 = vmatprep.subr.mxu0 0.0
    %1494 = vmatpush1.msra.mxu0 %v1458
    %1495 = vmatprep.subr.mxu0 0.0
    %1496 = vmatpush2.msra.mxu0 0.0
    %1497 = vmatprep.subr.mxu0 0.0
    %1498 = vmatpush2.msra.mxu0 0.0
    %1499 = vmatprep.subr.mxu0 0.0
    %1500 = vmatpush2.msra.mxu0 0.0
    %1501 = vmatprep.subr.mxu0 0.0
    %1502 = vmatpush2.msra.mxu0 0.0
    %1503 = vmatprep.subr.mxu0 0.0
    %1504 = vmatpush2.msra.mxu0 0.0
    %1505 = vmatprep.subr.mxu0 0.0
    %1506 = vmatpush2.msra.mxu0 0.0
    %1507 = vmatprep.subr.mxu0 0.0
    %1508 = vmatpush2.msra.mxu0 0.0
    %1509 = vmatprep.subr.mxu0 0.0
    %1510 = vmatpush2.msra.mxu0 0.0
    %1511 = vmatprep.subr.mxu0 0.0
    %1512 = vmatpush2.msra.mxu0 0.0
    %1513 = vmatprep.subr.mxu0 0.0
    %1514 = vmatpush2.msra.mxu0 0.0
    %1515 = vmatprep.subr.mxu0 0.0
    %1516 = vmatpush2.msra.mxu0 0.0
    %1517 = vmatprep.subr.mxu0 0.0
    %1518 = vmatpush2.msra.mxu0 0.0
    %1519 = vmatprep.subr.mxu0 0.0
    %1520 = vmatpush2.msra.mxu0 0.0
    %1521 = vmatprep.subr.mxu0 0.0
    %1522 = vmatpush2.msra.mxu0 0.0
    %1523 = vmatprep.subr.mxu0 0.0
    %1524 = vmatpush2.msra.mxu0 0.0
    %1525 = vmatprep.subr.mxu0 0.0
    %1526 = vmatpush2.msra.mxu0 0.0
    %1527 = vmatprep.mubr.f32.mxu0 0.0
    %1528 = vmatmul.mubr.f32.gmra.mxu0 %v1461
    %v1529 = vpop.f32.mrf.mxu0
    %v1530 = vadd.f32 0.0, %v1529
    %v1531 = vpop.f32.mrf.mxu0
    %1532 = vdwg.mxu0
    %1533 = vrot.lane.b32.xlu0 %v413, 112
    %v1534 = vpop.permute.xlu0 %1533
    %v1537 = vsel %vm420, %v1456, 0
    %1539 = vmatprep.subr.mxu0 0.0
    %1540 = vmatpush1.msra.mxu0 0.0
    %1541 = vmatprep.subr.mxu0 0.0
    %1542 = vmatpush1.msra.mxu0 0.0
    %1543 = vmatprep.subr.mxu0 0.0
    %1544 = vmatpush1.msra.mxu0 0.0
    %1545 = vmatprep.subr.mxu0 0.0
    %1546 = vmatpush1.msra.mxu0 0.0
    %1547 = vmatprep.subr.mxu0 0.0
    %1548 = vmatpush1.msra.mxu0 0.0
    %1549 = vmatprep.subr.mxu0 0.0
    %1550 = vmatpush1.msra.mxu0 0.0
    %1551 = vmatprep.subr.mxu0 0.0
    %1552 = vmatpush1.msra.mxu0 0.0
    %1553 = vmatprep.subr.mxu0 0.0
    %1554 = vmatpush1.msra.mxu0 0.0
    %1555 = vmatprep.subr.mxu0 0.0
    %1556 = vmatpush1.msra.mxu0 0.0
    %1557 = vmatprep.subr.mxu0 0.0
    %1558 = vmatpush1.msra.mxu0 0.0
    %1559 = vmatprep.subr.mxu0 0.0
    %1560 = vmatpush1.msra.mxu0 0.0
    %1561 = vmatprep.subr.mxu0 0.0
    %1562 = vmatpush1.msra.mxu0 0.0
    %1563 = vmatprep.subr.mxu0 0.0
    %1564 = vmatpush1.msra.mxu0 0.0
    %1565 = vmatprep.subr.mxu0 0.0
    %1566 = vmatpush1.msra.mxu0 0.0
    %1567 = vmatprep.subr.mxu0 0.0
    %1568 = vmatpush1.msra.mxu0 0.0
    %1569 = vmatprep.subr.mxu0 0.0
    %1570 = vmatpush1.msra.mxu0 %v1534
    %1571 = vmatprep.subr.mxu0 0.0
    %1572 = vmatpush2.msra.mxu0 0.0
    %1573 = vmatprep.subr.mxu0 0.0
    %1574 = vmatpush2.msra.mxu0 0.0
    %1575 = vmatprep.subr.mxu0 0.0
    %1576 = vmatpush2.msra.mxu0 0.0
    %1577 = vmatprep.subr.mxu0 0.0
    %1578 = vmatpush2.msra.mxu0 0.0
    %1579 = vmatprep.subr.mxu0 0.0
    %1580 = vmatpush2.msra.mxu0 0.0
    %1581 = vmatprep.subr.mxu0 0.0
    %1582 = vmatpush2.msra.mxu0 0.0
    %1583 = vmatprep.subr.mxu0 0.0
    %1584 = vmatpush2.msra.mxu0 0.0
    %1585 = vmatprep.subr.mxu0 0.0
    %1586 = vmatpush2.msra.mxu0 0.0
    %1587 = vmatprep.subr.mxu0 0.0
    %1588 = vmatpush2.msra.mxu0 0.0
    %1589 = vmatprep.subr.mxu0 0.0
    %1590 = vmatpush2.msra.mxu0 0.0
    %1591 = vmatprep.subr.mxu0 0.0
    %1592 = vmatpush2.msra.mxu0 0.0
    %1593 = vmatprep.subr.mxu0 0.0
    %1594 = vmatpush2.msra.mxu0 0.0
    %1595 = vmatprep.subr.mxu0 0.0
    %1596 = vmatpush2.msra.mxu0 0.0
    %1597 = vmatprep.subr.mxu0 0.0
    %1598 = vmatpush2.msra.mxu0 0.0
    %1599 = vmatprep.subr.mxu0 0.0
    %1600 = vmatpush2.msra.mxu0 0.0
    %1601 = vmatprep.subr.mxu0 0.0
    %1602 = vmatpush2.msra.mxu0 0.0
    %1603 = vmatprep.mubr.f32.mxu0 0.0
    %1604 = vmatmul.mubr.f32.gmra.mxu0 %v1537
    %v1605 = vpop.f32.mrf.mxu0
    %v1606 = vadd.f32 0.0, %v1605
    %v1607 = vpop.f32.mrf.mxu0
    %1608 = vdwg.mxu0
    %v1609 = vld [vmem:[#allocation13 + $0x10] sm:$0xff]
    %v1611 = vsel %vm420, %v1530, 0
    %v1614 = vsel %vm420, %v1606, 0
    %1616 = vmatprep.subr.mxu0 0.0
    %1617 = vmatpush1.msra.mxu0 0.0
    %1618 = vmatprep.subr.mxu0 0.0
    %1619 = vmatpush1.msra.mxu0 0.0
    %1620 = vmatprep.subr.mxu0 0.0
    %1621 = vmatpush1.msra.mxu0 0.0
    %1622 = vmatprep.subr.mxu0 0.0
    %1623 = vmatpush1.msra.mxu0 0.0
    %1624 = vmatprep.subr.mxu0 0.0
    %1625 = vmatpush1.msra.mxu0 0.0
    %1626 = vmatprep.subr.mxu0 0.0
    %1627 = vmatpush1.msra.mxu0 0.0
    %1628 = vmatprep.subr.mxu0 0.0
    %1629 = vmatpush1.msra.mxu0 0.0
    %1630 = vmatprep.subr.mxu0 0.0
    %1631 = vmatpush1.msra.mxu0 0.0
    %1632 = vmatprep.subr.mxu0 0.0
    %1633 = vmatpush1.msra.mxu0 0.0
    %1634 = vmatprep.subr.mxu0 0.0
    %1635 = vmatpush1.msra.mxu0 0.0
    %1636 = vmatprep.subr.mxu0 0.0
    %1637 = vmatpush1.msra.mxu0 0.0
    %1638 = vmatprep.subr.mxu0 0.0
    %1639 = vmatpush1.msra.mxu0 0.0
    %1640 = vmatprep.subr.mxu0 0.0
    %1641 = vmatpush1.msra.mxu0 0.0
    %1642 = vmatprep.subr.mxu0 0.0
    %1643 = vmatpush1.msra.mxu0 0.0
    %1644 = vmatprep.subr.mxu0 0.0
    %1645 = vmatpush1.msra.mxu0 0.0
    %1646 = vmatprep.subr.mxu0 0.0
    %1647 = vmatpush1.msra.mxu0 %v1609
    %1648 = vmatprep.subr.mxu0 0.0
    %1649 = vmatpush2.msra.mxu0 0.0
    %1650 = vmatprep.subr.mxu0 0.0
    %1651 = vmatpush2.msra.mxu0 0.0
    %1652 = vmatprep.subr.mxu0 0.0
    %1653 = vmatpush2.msra.mxu0 0.0
    %1654 = vmatprep.subr.mxu0 0.0
    %1655 = vmatpush2.msra.mxu0 0.0
    %1656 = vmatprep.subr.mxu0 0.0
    %1657 = vmatpush2.msra.mxu0 0.0
    %1658 = vmatprep.subr.mxu0 0.0
    %1659 = vmatpush2.msra.mxu0 0.0
    %1660 = vmatprep.subr.mxu0 0.0
    %1661 = vmatpush2.msra.mxu0 0.0
    %1662 = vmatprep.subr.mxu0 0.0
    %1663 = vmatpush2.msra.mxu0 0.0
    %1664 = vmatprep.subr.mxu0 0.0
    %1665 = vmatpush2.msra.mxu0 0.0
    %1666 = vmatprep.subr.mxu0 0.0
    %1667 = vmatpush2.msra.mxu0 0.0
    %1668 = vmatprep.subr.mxu0 0.0
    %1669 = vmatpush2.msra.mxu0 0.0
    %1670 = vmatprep.subr.mxu0 0.0
    %1671 = vmatpush2.msra.mxu0 0.0
    %1672 = vmatprep.subr.mxu0 0.0
    %1673 = vmatpush2.msra.mxu0 0.0
    %1674 = vmatprep.subr.mxu0 0.0
    %1675 = vmatpush2.msra.mxu0 0.0
    %1676 = vmatprep.subr.mxu0 0.0
    %1677 = vmatpush2.msra.mxu0 0.0
    %1678 = vmatprep.subr.mxu0 0.0
    %1679 = vmatpush2.msra.mxu0 0.0
    %1680 = vmatprep.mubr.f32.mxu0 0.0
    %1681 = vmatmul.mubr.f32.gmra.mxu0 %v1611
    %v1682 = vpop.f32.mrf.mxu0
    %v1683 = vadd.f32 0.0, %v1682
    %v1684 = vpop.f32.mrf.mxu0
    %1685 = vmatprep.mubr.f32.mxu0 0.0
    %1686 = vmatmul.mubr.f32.gmra.mxu0 %v1614
    %v1687 = vpop.f32.mrf.mxu0
    %v1688 = vadd.f32 0.0, %v1687
    %v1689 = vpop.f32.mrf.mxu0
    %1690 = vdwg.mxu0
    %v1691 = vadd.f32 %v1265, %v1683
    %v1692 = vadd.f32 %v1270, %v1688
    %1693 = vrot.lane.b32.xlu0 %v228, 104
    %v1694 = vpop.permute.xlu0 %1693
    %1695 = vrot.lane.b32.xlu0 %v318, 104
    %v1696 = vpop.permute.xlu0 %1695
    %v1697 = vsel %vm420, %v1694, 0
    %v1699 = vsel %vm420, %v1696, 0
    %1701 = vmatprep.subr.mxu0 0.0
    %1702 = vmatpush1.xpose.msra.mxu0 0.0
    %1703 = vmatprep.subr.mxu0 0.0
    %1704 = vmatpush1.xpose.msra.mxu0 0.0
    %1705 = vmatprep.subr.mxu0 0.0
    %1706 = vmatpush1.xpose.msra.mxu0 0.0
    %1707 = vmatprep.subr.mxu0 0.0
    %1708 = vmatpush1.xpose.msra.mxu0 0.0
    %1709 = vmatprep.subr.mxu0 0.0
    %1710 = vmatpush1.xpose.msra.mxu0 0.0
    %1711 = vmatprep.subr.mxu0 0.0
    %1712 = vmatpush1.xpose.msra.mxu0 0.0
    %1713 = vmatprep.subr.mxu0 0.0
    %1714 = vmatpush1.xpose.msra.mxu0 0.0
    %1715 = vmatprep.subr.mxu0 0.0
    %1716 = vmatpush1.xpose.msra.mxu0 0.0
    %1717 = vmatprep.subr.mxu0 0.0
    %1718 = vmatpush1.xpose.msra.mxu0 0.0
    %1719 = vmatprep.subr.mxu0 0.0
    %1720 = vmatpush1.xpose.msra.mxu0 0.0
    %1721 = vmatprep.subr.mxu0 0.0
    %1722 = vmatpush1.xpose.msra.mxu0 0.0
    %1723 = vmatprep.subr.mxu0 0.0
    %1724 = vmatpush1.xpose.msra.mxu0 0.0
    %1725 = vmatprep.subr.mxu0 0.0
    %1726 = vmatpush1.xpose.msra.mxu0 0.0
    %1727 = vmatprep.subr.mxu0 0.0
    %1728 = vmatpush1.xpose.msra.mxu0 0.0
    %1729 = vmatprep.subr.mxu0 0.0
    %1730 = vmatpush1.xpose.msra.mxu0 0.0
    %1731 = vmatprep.subr.mxu0 0.0
    %1732 = vmatpush1.xpose.msra.mxu0 %v1699
    %1733 = vmatprep.subr.mxu0 0.0
    %1734 = vmatpush2.xpose.msra.mxu0 0.0
    %1735 = vmatprep.subr.mxu0 0.0
    %1736 = vmatpush2.xpose.msra.mxu0 0.0
    %1737 = vmatprep.subr.mxu0 0.0
    %1738 = vmatpush2.xpose.msra.mxu0 0.0
    %1739 = vmatprep.subr.mxu0 0.0
    %1740 = vmatpush2.xpose.msra.mxu0 0.0
    %1741 = vmatprep.subr.mxu0 0.0
    %1742 = vmatpush2.xpose.msra.mxu0 0.0
    %1743 = vmatprep.subr.mxu0 0.0
    %1744 = vmatpush2.xpose.msra.mxu0 0.0
    %1745 = vmatprep.subr.mxu0 0.0
    %1746 = vmatpush2.xpose.msra.mxu0 0.0
    %1747 = vmatprep.subr.mxu0 0.0
    %1748 = vmatpush2.xpose.msra.mxu0 0.0
    %1749 = vmatprep.subr.mxu0 0.0
    %1750 = vmatpush2.xpose.msra.mxu0 0.0
    %1751 = vmatprep.subr.mxu0 0.0
    %1752 = vmatpush2.xpose.msra.mxu0 0.0
    %1753 = vmatprep.subr.mxu0 0.0
    %1754 = vmatpush2.xpose.msra.mxu0 0.0
    %1755 = vmatprep.subr.mxu0 0.0
    %1756 = vmatpush2.xpose.msra.mxu0 0.0
    %1757 = vmatprep.subr.mxu0 0.0
    %1758 = vmatpush2.xpose.msra.mxu0 0.0
    %1759 = vmatprep.subr.mxu0 0.0
    %1760 = vmatpush2.xpose.msra.mxu0 0.0
    %1761 = vmatprep.subr.mxu0 0.0
    %1762 = vmatpush2.xpose.msra.mxu0 0.0
    %1763 = vmatprep.subr.mxu0 0.0
    %1764 = vmatpush2.xpose.msra.mxu0 0.0
    %1765 = vmatprep.mubr.f32.mxu0 0.0
    %1766 = vmatmul.mubr.f32.gmra.mxu0 %v1697
    %v1767 = vpop.f32.mrf.mxu0
    %v1768 = vadd.f32 0.0, %v1767
    %v1769 = vpop.f32.mrf.mxu0
    %1770 = vdwg.mxu0
    %1771 = vrot.lane.b32.xlu0 %v233, 104
    %v1772 = vpop.permute.xlu0 %1771
    %1773 = vrot.lane.b32.xlu0 %v323, 104
    %v1774 = vpop.permute.xlu0 %1773
    %v1775 = vsel %vm420, %v1772, 0
    %v1777 = vsel %vm420, %v1774, 0
    %1779 = vmatprep.subr.mxu0 0.0
    %1780 = vmatpush1.xpose.msra.mxu0 0.0
    %1781 = vmatprep.subr.mxu0 0.0
    %1782 = vmatpush1.xpose.msra.mxu0 0.0
    %1783 = vmatprep.subr.mxu0 0.0
    %1784 = vmatpush1.xpose.msra.mxu0 0.0
    %1785 = vmatprep.subr.mxu0 0.0
    %1786 = vmatpush1.xpose.msra.mxu0 0.0
    %1787 = vmatprep.subr.mxu0 0.0
    %1788 = vmatpush1.xpose.msra.mxu0 0.0
    %1789 = vmatprep.subr.mxu0 0.0
    %1790 = vmatpush1.xpose.msra.mxu0 0.0
    %1791 = vmatprep.subr.mxu0 0.0
    %1792 = vmatpush1.xpose.msra.mxu0 0.0
    %1793 = vmatprep.subr.mxu0 0.0
    %1794 = vmatpush1.xpose.msra.mxu0 0.0
    %1795 = vmatprep.subr.mxu0 0.0
    %1796 = vmatpush1.xpose.msra.mxu0 0.0
    %1797 = vmatprep.subr.mxu0 0.0
    %1798 = vmatpush1.xpose.msra.mxu0 0.0
    %1799 = vmatprep.subr.mxu0 0.0
    %1800 = vmatpush1.xpose.msra.mxu0 0.0
    %1801 = vmatprep.subr.mxu0 0.0
    %1802 = vmatpush1.xpose.msra.mxu0 0.0
    %1803 = vmatprep.subr.mxu0 0.0
    %1804 = vmatpush1.xpose.msra.mxu0 0.0
    %1805 = vmatprep.subr.mxu0 0.0
    %1806 = vmatpush1.xpose.msra.mxu0 0.0
    %1807 = vmatprep.subr.mxu0 0.0
    %1808 = vmatpush1.xpose.msra.mxu0 0.0
    %1809 = vmatprep.subr.mxu0 0.0
    %1810 = vmatpush1.xpose.msra.mxu0 %v1777
    %1811 = vmatprep.subr.mxu0 0.0
    %1812 = vmatpush2.xpose.msra.mxu0 0.0
    %1813 = vmatprep.subr.mxu0 0.0
    %1814 = vmatpush2.xpose.msra.mxu0 0.0
    %1815 = vmatprep.subr.mxu0 0.0
    %1816 = vmatpush2.xpose.msra.mxu0 0.0
    %1817 = vmatprep.subr.mxu0 0.0
    %1818 = vmatpush2.xpose.msra.mxu0 0.0
    %1819 = vmatprep.subr.mxu0 0.0
    %1820 = vmatpush2.xpose.msra.mxu0 0.0
    %1821 = vmatprep.subr.mxu0 0.0
    %1822 = vmatpush2.xpose.msra.mxu0 0.0
    %1823 = vmatprep.subr.mxu0 0.0
    %1824 = vmatpush2.xpose.msra.mxu0 0.0
    %1825 = vmatprep.subr.mxu0 0.0
    %1826 = vmatpush2.xpose.msra.mxu0 0.0
    %1827 = vmatprep.subr.mxu0 0.0
    %1828 = vmatpush2.xpose.msra.mxu0 0.0
    %1829 = vmatprep.subr.mxu0 0.0
    %1830 = vmatpush2.xpose.msra.mxu0 0.0
    %1831 = vmatprep.subr.mxu0 0.0
    %1832 = vmatpush2.xpose.msra.mxu0 0.0
    %1833 = vmatprep.subr.mxu0 0.0
    %1834 = vmatpush2.xpose.msra.mxu0 0.0
    %1835 = vmatprep.subr.mxu0 0.0
    %1836 = vmatpush2.xpose.msra.mxu0 0.0
    %1837 = vmatprep.subr.mxu0 0.0
    %1838 = vmatpush2.xpose.msra.mxu0 0.0
    %1839 = vmatprep.subr.mxu0 0.0
    %1840 = vmatpush2.xpose.msra.mxu0 0.0
    %1841 = vmatprep.subr.mxu0 0.0
    %1842 = vmatpush2.xpose.msra.mxu0 0.0
    %1843 = vmatprep.mubr.f32.mxu0 0.0
    %1844 = vmatmul.mubr.f32.gmra.mxu0 %v1775
    %v1845 = vpop.f32.mrf.mxu0
    %v1846 = vadd.f32 0.0, %v1845
    %v1847 = vpop.f32.mrf.mxu0
    %1848 = vdwg.mxu0
    %v1849 = vmul.f32 %v1768, 0.35355338
    %v1850 = vmul.f32 %v1846, 0.35355338
    %v1851 = vmul.f32 %v1849, %v580
    %v1852 = vmul.f32 %v1850, %v584
    %v1853 = vadd.f32 %v1851, %v594
    %v1854 = vadd.f32 %v1852, %v598
    %v1855 = vsel %vm420, %v1853, -inf
    %1856 = vmax.xlane.f32.xlu0 %v1855
    %v1857 = vpop.xlane.xlu0 %1856
    %v1858 = vsel %vm420, %v1854, -inf
    %1859 = vmax.xlane.f32.xlu0 %v1858
    %v1860 = vpop.xlane.xlu0 %1859
    %v1861 = vsub.f32 %v1853, %v1857
    %v1862 = vsub.f32 %v1854, %v1860
    %v1863 = vmul.f32 %v1861, 1.442695
    %v1864 = vpow.pop %v1863
    %v1865 = vmul.f32 %v1862, 1.442695
    %v1866 = vpow.pop %v1865
    %v1867 = vsel %vm420, %v1864, 0.0
    %1868 = vadd.xlane.f32.xlu0 %v1867
    %v1869 = vpop.xlane.xlu0 %1868
    %v1870 = vsel %vm420, %v1866, 0.0
    %1871 = vadd.xlane.f32.xlu0 %v1870
    %v1872 = vpop.xlane.xlu0 %1871
    %v1873 = vrcp.pop %v1869
    %v1874 = vrcp.pop %v1872
    %v1875 = vmul.f32 %v1864, %v1873
    %v1876 = vmul.f32 %v1866, %v1874
    %1877 = vrot.lane.b32.xlu0 %v408, 104
    %v1878 = vpop.permute.xlu0 %1877
    %v1881 = vsel %vm420, %v1875, 0
    %1883 = vmatprep.subr.mxu0 0.0
    %1884 = vmatpush1.msra.mxu0 0.0
    %1885 = vmatprep.subr.mxu0 0.0
    %1886 = vmatpush1.msra.mxu0 0.0
    %1887 = vmatprep.subr.mxu0 0.0
    %1888 = vmatpush1.msra.mxu0 0.0
    %1889 = vmatprep.subr.mxu0 0.0
    %1890 = vmatpush1.msra.mxu0 0.0
    %1891 = vmatprep.subr.mxu0 0.0
    %1892 = vmatpush1.msra.mxu0 0.0
    %1893 = vmatprep.subr.mxu0 0.0
    %1894 = vmatpush1.msra.mxu0 0.0
    %1895 = vmatprep.subr.mxu0 0.0
    %1896 = vmatpush1.msra.mxu0 0.0
    %1897 = vmatprep.subr.mxu0 0.0
    %1898 = vmatpush1.msra.mxu0 0.0
    %1899 = vmatprep.subr.mxu0 0.0
    %1900 = vmatpush1.msra.mxu0 0.0
    %1901 = vmatprep.subr.mxu0 0.0
    %1902 = vmatpush1.msra.mxu0 0.0
    %1903 = vmatprep.subr.mxu0 0.0
    %1904 = vmatpush1.msra.mxu0 0.0
    %1905 = vmatprep.subr.mxu0 0.0
    %1906 = vmatpush1.msra.mxu0 0.0
    %1907 = vmatprep.subr.mxu0 0.0
    %1908 = vmatpush1.msra.mxu0 0.0
    %1909 = vmatprep.subr.mxu0 0.0
    %1910 = vmatpush1.msra.mxu0 0.0
    %1911 = vmatprep.subr.mxu0 0.0
    %1912 = vmatpush1.msra.mxu0 0.0
    %1913 = vmatprep.subr.mxu0 0.0
    %1914 = vmatpush1.msra.mxu0 %v1878
    %1915 = vmatprep.subr.mxu0 0.0
    %1916 = vmatpush2.msra.mxu0 0.0
    %1917 = vmatprep.subr.mxu0 0.0
    %1918 = vmatpush2.msra.mxu0 0.0
    %1919 = vmatprep.subr.mxu0 0.0
    %1920 = vmatpush2.msra.mxu0 0.0
    %1921 = vmatprep.subr.mxu0 0.0
    %1922 = vmatpush2.msra.mxu0 0.0
    %1923 = vmatprep.subr.mxu0 0.0
    %1924 = vmatpush2.msra.mxu0 0.0
    %1925 = vmatprep.subr.mxu0 0.0
    %1926 = vmatpush2.msra.mxu0 0.0
    %1927 = vmatprep.subr.mxu0 0.0
    %1928 = vmatpush2.msra.mxu0 0.0
    %1929 = vmatprep.subr.mxu0 0.0
    %1930 = vmatpush2.msra.mxu0 0.0
    %1931 = vmatprep.subr.mxu0 0.0
    %1932 = vmatpush2.msra.mxu0 0.0
    %1933 = vmatprep.subr.mxu0 0.0
    %1934 = vmatpush2.msra.mxu0 0.0
    %1935 = vmatprep.subr.mxu0 0.0
    %1936 = vmatpush2.msra.mxu0 0.0
    %1937 = vmatprep.subr.mxu0 0.0
    %1938 = vmatpush2.msra.mxu0 0.0
    %1939 = vmatprep.subr.mxu0 0.0
    %1940 = vmatpush2.msra.mxu0 0.0
    %1941 = vmatprep.subr.mxu0 0.0
    %1942 = vmatpush2.msra.mxu0 0.0
    %1943 = vmatprep.subr.mxu0 0.0
    %1944 = vmatpush2.msra.mxu0 0.0
    %1945 = vmatprep.subr.mxu0 0.0
    %1946 = vmatpush2.msra.mxu0 0.0
    %1947 = vmatprep.mubr.f32.mxu0 0.0
    %1948 = vmatmul.mubr.f32.gmra.mxu0 %v1881
    %v1949 = vpop.f32.mrf.mxu0
    %v1950 = vadd.f32 0.0, %v1949
    %v1951 = vpop.f32.mrf.mxu0
    %1952 = vdwg.mxu0
    %1953 = vrot.lane.b32.xlu0 %v413, 104
    %v1954 = vpop.permute.xlu0 %1953
    %v1957 = vsel %vm420, %v1876, 0
    %1959 = vmatprep.subr.mxu0 0.0
    %1960 = vmatpush1.msra.mxu0 0.0
    %1961 = vmatprep.subr.mxu0 0.0
    %1962 = vmatpush1.msra.mxu0 0.0
    %1963 = vmatprep.subr.mxu0 0.0
    %1964 = vmatpush1.msra.mxu0 0.0
    %1965 = vmatprep.subr.mxu0 0.0
    %1966 = vmatpush1.msra.mxu0 0.0
    %1967 = vmatprep.subr.mxu0 0.0
    %1968 = vmatpush1.msra.mxu0 0.0
    %1969 = vmatprep.subr.mxu0 0.0
    %1970 = vmatpush1.msra.mxu0 0.0
    %1971 = vmatprep.subr.mxu0 0.0
    %1972 = vmatpush1.msra.mxu0 0.0
    %1973 = vmatprep.subr.mxu0 0.0
    %1974 = vmatpush1.msra.mxu0 0.0
    %1975 = vmatprep.subr.mxu0 0.0
    %1976 = vmatpush1.msra.mxu0 0.0
    %1977 = vmatprep.subr.mxu0 0.0
    %1978 = vmatpush1.msra.mxu0 0.0
    %1979 = vmatprep.subr.mxu0 0.0
    %1980 = vmatpush1.msra.mxu0 0.0
    %1981 = vmatprep.subr.mxu0 0.0
    %1982 = vmatpush1.msra.mxu0 0.0
    %1983 = vmatprep.subr.mxu0 0.0
    %1984 = vmatpush1.msra.mxu0 0.0
    %1985 = vmatprep.subr.mxu0 0.0
    %1986 = vmatpush1.msra.mxu0 0.0
    %1987 = vmatprep.subr.mxu0 0.0
    %1988 = vmatpush1.msra.mxu0 0.0
    %1989 = vmatprep.subr.mxu0 0.0
    %1990 = vmatpush1.msra.mxu0 %v1954
    %1991 = vmatprep.subr.mxu0 0.0
    %1992 = vmatpush2.msra.mxu0 0.0
    %1993 = vmatprep.subr.mxu0 0.0
    %1994 = vmatpush2.msra.mxu0 0.0
    %1995 = vmatprep.subr.mxu0 0.0
    %1996 = vmatpush2.msra.mxu0 0.0
    %1997 = vmatprep.subr.mxu0 0.0
    %1998 = vmatpush2.msra.mxu0 0.0
    %1999 = vmatprep.subr.mxu0 0.0
    %2000 = vmatpush2.msra.mxu0 0.0
    %2001 = vmatprep.subr.mxu0 0.0
    %2002 = vmatpush2.msra.mxu0 0.0
    %2003 = vmatprep.subr.mxu0 0.0
    %2004 = vmatpush2.msra.mxu0 0.0
    %2005 = vmatprep.subr.mxu0 0.0
    %2006 = vmatpush2.msra.mxu0 0.0
    %2007 = vmatprep.subr.mxu0 0.0
    %2008 = vmatpush2.msra.mxu0 0.0
    %2009 = vmatprep.subr.mxu0 0.0
    %2010 = vmatpush2.msra.mxu0 0.0
    %2011 = vmatprep.subr.mxu0 0.0
    %2012 = vmatpush2.msra.mxu0 0.0
    %2013 = vmatprep.subr.mxu0 0.0
    %2014 = vmatpush2.msra.mxu0 0.0
    %2015 = vmatprep.subr.mxu0 0.0
    %2016 = vmatpush2.msra.mxu0 0.0
    %2017 = vmatprep.subr.mxu0 0.0
    %2018 = vmatpush2.msra.mxu0 0.0
    %2019 = vmatprep.subr.mxu0 0.0
    %2020 = vmatpush2.msra.mxu0 0.0
    %2021 = vmatprep.subr.mxu0 0.0
    %2022 = vmatpush2.msra.mxu0 0.0
    %2023 = vmatprep.mubr.f32.mxu0 0.0
    %2024 = vmatmul.mubr.f32.gmra.mxu0 %v1957
    %v2025 = vpop.f32.mrf.mxu0
    %v2026 = vadd.f32 0.0, %v2025
    %v2027 = vpop.f32.mrf.mxu0
    %2028 = vdwg.mxu0
    %v2029 = vld [vmem:[#allocation13 + $0x18] sm:$0xff]
    %v2031 = vsel %vm420, %v1950, 0
    %v2034 = vsel %vm420, %v2026, 0
    %2036 = vmatprep.subr.mxu0 0.0
    %2037 = vmatpush1.msra.mxu0 0.0
    %2038 = vmatprep.subr.mxu0 0.0
    %2039 = vmatpush1.msra.mxu0 0.0
    %2040 = vmatprep.subr.mxu0 0.0
    %2041 = vmatpush1.msra.mxu0 0.0
    %2042 = vmatprep.subr.mxu0 0.0
    %2043 = vmatpush1.msra.mxu0 0.0
    %2044 = vmatprep.subr.mxu0 0.0
    %2045 = vmatpush1.msra.mxu0 0.0
    %2046 = vmatprep.subr.mxu0 0.0
    %2047 = vmatpush1.msra.mxu0 0.0
    %2048 = vmatprep.subr.mxu0 0.0
    %2049 = vmatpush1.msra.mxu0 0.0
    %2050 = vmatprep.subr.mxu0 0.0
    %2051 = vmatpush1.msra.mxu0 0.0
    %2052 = vmatprep.subr.mxu0 0.0
    %2053 = vmatpush1.msra.mxu0 0.0
    %2054 = vmatprep.subr.mxu0 0.0
    %2055 = vmatpush1.msra.mxu0 0.0
    %2056 = vmatprep.subr.mxu0 0.0
    %2057 = vmatpush1.msra.mxu0 0.0
    %2058 = vmatprep.subr.mxu0 0.0
    %2059 = vmatpush1.msra.mxu0 0.0
    %2060 = vmatprep.subr.mxu0 0.0
    %2061 = vmatpush1.msra.mxu0 0.0
    %2062 = vmatprep.subr.mxu0 0.0
    %2063 = vmatpush1.msra.mxu0 0.0
    %2064 = vmatprep.subr.mxu0 0.0
    %2065 = vmatpush1.msra.mxu0 0.0
    %2066 = vmatprep.subr.mxu0 0.0
    %2067 = vmatpush1.msra.mxu0 %v2029
    %2068 = vmatprep.subr.mxu0 0.0
    %2069 = vmatpush2.msra.mxu0 0.0
    %2070 = vmatprep.subr.mxu0 0.0
    %2071 = vmatpush2.msra.mxu0 0.0
    %2072 = vmatprep.subr.mxu0 0.0
    %2073 = vmatpush2.msra.mxu0 0.0
    %2074 = vmatprep.subr.mxu0 0.0
    %2075 = vmatpush2.msra.mxu0 0.0
    %2076 = vmatprep.subr.mxu0 0.0
    %2077 = vmatpush2.msra.mxu0 0.0
    %2078 = vmatprep.subr.mxu0 0.0
    %2079 = vmatpush2.msra.mxu0 0.0
    %2080 = vmatprep.subr.mxu0 0.0
    %2081 = vmatpush2.msra.mxu0 0.0
    %2082 = vmatprep.subr.mxu0 0.0
    %2083 = vmatpush2.msra.mxu0 0.0
    %2084 = vmatprep.subr.mxu0 0.0
    %2085 = vmatpush2.msra.mxu0 0.0
    %2086 = vmatprep.subr.mxu0 0.0
    %2087 = vmatpush2.msra.mxu0 0.0
    %2088 = vmatprep.subr.mxu0 0.0
    %2089 = vmatpush2.msra.mxu0 0.0
    %2090 = vmatprep.subr.mxu0 0.0
    %2091 = vmatpush2.msra.mxu0 0.0
    %2092 = vmatprep.subr.mxu0 0.0
    %2093 = vmatpush2.msra.mxu0 0.0
    %2094 = vmatprep.subr.mxu0 0.0
    %2095 = vmatpush2.msra.mxu0 0.0
    %2096 = vmatprep.subr.mxu0 0.0
    %2097 = vmatpush2.msra.mxu0 0.0
    %2098 = vmatprep.subr.mxu0 0.0
    %2099 = vmatpush2.msra.mxu0 0.0
    %2100 = vmatprep.mubr.f32.mxu0 0.0
    %2101 = vmatmul.mubr.f32.gmra.mxu0 %v2031
    %v2102 = vpop.f32.mrf.mxu0
    %v2103 = vadd.f32 0.0, %v2102
    %v2104 = vpop.f32.mrf.mxu0
    %2105 = vmatprep.mubr.f32.mxu0 0.0
    %2106 = vmatmul.mubr.f32.gmra.mxu0 %v2034
    %v2107 = vpop.f32.mrf.mxu0
    %v2108 = vadd.f32 0.0, %v2107
    %v2109 = vpop.f32.mrf.mxu0
    %2110 = vdwg.mxu0
    %v2111 = vadd.f32 %v1691, %v2103
    %v2112 = vadd.f32 %v1692, %v2108
    %v2113 = vld [vmem:[%s11] sm:$0x1]
    %v2115 = vlaneseq
    %v2116 = vshrl.u32 %v2115, 7
    %v2117 = vsub.s32 0, %v2116
    %v2118 = vrot.slane %v2113, %v2117
    %v2120 = vadd.f32 %v2111, %v2118
    %v2121 = vadd.f32 %v2112, %v2118
    %2122 = vst [vmem:[#allocation14] sm:$0xff] %v2120
    %2123 = vst [vmem:[#allocation14 + $0x8] sm:$0xff] %v2121
    // Predicated region
    $region78: #{tpu_custom_call.1} parent=1 // pred_check
      _
    $region79: #{tpu_custom_call.1} parent=1 // pred_check_branch
      %2125 = sbr.rel (0) target = $region81
    $region80: #{tpu_custom_call.1} parent=1 // pred_region
      %s2127 = ssub.s32 256, 256
      %2128 = vsyncadd [#allocation4], %s2127
      %s2129 = sshll.u32 [#allocation14], 4
      %s2130 = int_to_ptr.vmem [resolvable:$true] %s2129
      %2135 = dma.vmem_to_hbm [thread:$0]  %s2130, 256, %s12, [#allocation4], 128, 128, 8
    $region81: #{tpu_custom_call.1} parent=1 // pred_fallthru
      _
    // Predicated region
    $region82: #{tpu_custom_call.1} parent=1 // pred_check
      _
    $region83: #{tpu_custom_call.1} parent=1 // pred_check_branch
      %2137 = sbr.rel (0) target = $region85
    $region84: #{tpu_custom_call.1} parent=1 // pred_region
      %2138 = dma.done [#allocation4], 256
    $region85: #{tpu_custom_call.1} parent=1 // pred_fallthru
      _
    %2139 = vsyncpa [#allocation3], 1
    %2140 = vsyncpa [#allocation6], 1
    %2141 = vsyncpa [#allocation9], 1
    %2142 = vsyncpa [#allocation12], 1
    %2143 = vsyncpa [#allocation4], 1

</llo_original>
